<compile_context>
chip_gen: v6e
topology: v6e:2x2x1
jax: 0.10.0
libtpu: 0.0.40
codegen_flags: <defaults>
</compile_context>

<pallas_src>
import jax
import jax.numpy as jnp
from jax import lax
from jax.experimental import pallas as pl
from jax.experimental.pallas import tpu as pltpu

LANE = 128            # lane-dense output width: output channels padded to this
TILE_M = 512          # max M tile (multiple of 16 for bf16 sublane packing)
MAX_WHOLE_K = 4096    # K above this falls back to a tiled reduction
TILE_K = 512
VMEM_LIMIT = 32 * 1024 * 1024   # safe on v5e/v6e (128 MiB) and v7x (64 MiB)

CONV_CFG = ((8, 4), (4, 2), (3, 1))   # (kernel_size, stride) for conv1..conv3
CONV_IN_C = (4, 32, 64)               # real input channels per conv layer


def _round_up(x, m):
    return (x + m - 1) // m * m


# ---------------------------------------------------------------------------
# Pallas kernels
# ---------------------------------------------------------------------------
def _matmul_bias_relu_kernel(x_ref, w_ref, b_ref, o_ref):
    """Whole-K: out = relu(x @ w + b), single MXU pass per M tile."""
    o_ref[...] = jnp.maximum(
        jnp.dot(x_ref[...], w_ref[...], preferred_element_type=jnp.float32)
        + b_ref[...], 0.0).astype(o_ref.dtype)


def _matmul_bias_relu_acc_kernel(x_ref, w_ref, b_ref, o_ref, acc_ref):
    """Fallback for K > MAX_WHOLE_K: K-tiled reduction with f32 accumulator."""
    k = pl.program_id(1)

    @pl.when(k == 0)
    def _init():
        acc_ref[...] = jnp.zeros_like(acc_ref)

    acc_ref[...] += jnp.dot(x_ref[...], w_ref[...],
                            preferred_element_type=jnp.float32)

    @pl.when(k == pl.num_programs(1) - 1)
    def _finalize():
        o_ref[...] = jnp.maximum(acc_ref[...] + b_ref[...], 0.0
                                 ).astype(o_ref.dtype)


def linear_bias_relu(x, w, b, *, out_dtype=jnp.float32):
    """relu(x @ w + b).  x:(M,K) bf16, w:(K,N) bf16, b:(1,N) f32, N%128==0."""
    M, K = x.shape
    K2, N = w.shape
    assert K == K2 and b.shape == (1, N) and N % LANE == 0

    # >=2 M tiles when possible (v7x dual-TC), multiple of 16 (bf16 sublanes).
    tm = min(TILE_M, _round_up(pl.cdiv(M, 2), 16))
    mt = pl.cdiv(M, tm)

    if K <= MAX_WHOLE_K:
        # Whole-K: weight/bias block indices are constant -> VMEM resident.
        return pl.pallas_call(
            _matmul_bias_relu_kernel,
            out_shape=jax.ShapeDtypeStruct((M, N), out_dtype),
            grid=(mt,),
            in_specs=[
                pl.BlockSpec((tm, K), lambda m: (m, 0)),
                pl.BlockSpec((K, N), lambda m: (0, 0)),
                pl.BlockSpec((1, N), lambda m: (0, 0)),
            ],
            out_specs=pl.BlockSpec((tm, N), lambda m: (m, 0)),
            compiler_params=pltpu.CompilerParams(
                dimension_semantics=("parallel",),
                vmem_limit_bytes=VMEM_LIMIT,
            ),
        )(x, w, b)

    # Fallback: large K, zero-pad once here and tile the reduction.
    kp = _round_up(K, TILE_K)
    x = jnp.pad(x, ((0, 0), (0, kp - K)))
    w = jnp.pad(w, ((0, kp - K), (0, 0)))
    nk = kp // TILE_K
    return pl.pallas_call(
        _matmul_bias_relu_acc_kernel,
        out_shape=jax.ShapeDtypeStruct((M, N), out_dtype),
        grid=(mt, nk),
        in_specs=[
            pl.BlockSpec((tm, TILE_K), lambda m, k: (m, k)),
            pl.BlockSpec((TILE_K, N), lambda m, k: (k, 0)),
            pl.BlockSpec((1, N), lambda m, k: (0, 0)),
        ],
        out_specs=pl.BlockSpec((tm, N), lambda m, k: (m, 0)),
        scratch_shapes=[pltpu.VMEM((tm, N), jnp.float32)],
        compiler_params=pltpu.CompilerParams(
            dimension_semantics=("parallel", "arbitrary"),
            vmem_limit_bytes=VMEM_LIMIT,
        ),
    )(x, w, b)


# ---------------------------------------------------------------------------
# Glue: NHWC im2col; slices each tap back to the real channel count so the
# zero-padded output channels of the previous layer never enter the next K.
# ---------------------------------------------------------------------------
def _im2col_nhwc(x, kh, kw, stride, real_c):
    n, h, w, _ = x.shape
    oh = (h - kh) // stride + 1
    ow = (w - kw) // stride + 1
    cols = []
    for i in range(kh):
        for j in range(kw):
            cols.append(x[:, i:i + stride * oh:stride,
                          j:j + stride * ow:stride, :real_c])
    patches = jnp.concatenate(cols, axis=-1)        # (n, oh, ow, kh*kw*real_c)
    return patches.reshape(n * oh * ow, kh * kw * real_c), oh, ow


# ---------------------------------------------------------------------------
# Parameters (PyTorch layout) and one-time kernel-friendly preparation
# ---------------------------------------------------------------------------
def _out_len(l, k, s):
    return (l - k) // s + 1


def _conv_out_hw(sizes):
    convh = _out_len(_out_len(_out_len(sizes[0], 8, 4), 4, 2), 3, 1)
    convw = _out_len(_out_len(_out_len(sizes[1], 8, 4), 4, 2), 3, 1)
    return convh, convw


def init_params(key, sizes, n_actions, n_qstates):
    """Parameters in PyTorch layouts (OIHW conv weights, (out,in) fc weight)."""
    convh, convw = _conv_out_hw(sizes)
    fc_size = convw * convh * 64
    ks = jax.random.split(key, 8)
    return {
        "w1": jax.random.normal(ks[0], (32, 4, 8, 8), jnp.float32) * 0.05,
        "b1": jax.random.normal(ks[1], (32,), jnp.float32) * 0.05,
        "w2": jax.random.normal(ks[2], (64, 32, 4, 4), jnp.float32) * 0.05,
        "b2": jax.random.normal(ks[3], (64,), jnp.float32) * 0.05,
        "w3": jax.random.normal(ks[4], (64, 64, 3, 3), jnp.float32) * 0.05,
        "b3": jax.random.normal(ks[5], (64,), jnp.float32) * 0.05,
        "fcw": jax.random.normal(ks[6], (n_actions, fc_size + n_qstates),
                                 jnp.float32) * 0.05,
        "fcb": jax.random.normal(ks[7], (n_actions,), jnp.float32) * 0.05,
    }


def prepare_params(params, sizes, n_actions, n_qstates):
    """One-time prep: pad OUTPUT channels to 128 (zero weights/bias), keep the
    K side un-padded, permute FC columns to the NHWC flatten order, pad the FC
    K to a multiple of 128 with zero rows, lay weights out as (K, N) and cast
    matmul operands to bf16.  Biases stay f32."""

    def prep_conv(w, b):
        oc, ic, kh, kw = w.shape
        wt = jnp.transpose(w, (2, 3, 1, 0))                  # (kh, kw, ic, oc)
        wt = jnp.pad(wt, ((0, 0), (0, 0), (0, 0), (0, LANE - oc)))
        wt = wt.reshape(kh * kw * ic, LANE).astype(jnp.bfloat16)
        bt = jnp.pad(b, (0, LANE - oc)).astype(jnp.float32).reshape(1, LANE)
        return wt, bt

    convs = tuple(prep_conv(params[f"w{i}"], params[f"b{i}"])
                  for i in (1, 2, 3))

    convh, convw = _conv_out_hw(sizes)
    fc_size = convw * convh * 64
    a = n_actions
    fcw = params["fcw"]                                      # (A, fc_size + Q)
    # Reorder the conv part of the FC columns from NCHW flatten (c, h, w) to
    # the NHWC flatten (h, w, c) used by the kernel path (no channel padding).
    w_conv = fcw[:, :fc_size].reshape(a, 64, convh, convw)
    w_conv = jnp.transpose(w_conv, (0, 2, 3, 1)).reshape(a, fc_size)
    w_all = jnp.concatenate([w_conv, fcw[:, fc_size:]], axis=1)
    fc_k = fc_size + n_qstates
    fc_k_pad = _round_up(fc_k, LANE)
    w_all = jnp.pad(w_all, ((0, LANE - a), (0, fc_k_pad - fc_k)))
    fc_w = jnp.transpose(w_all).astype(jnp.bfloat16)         # (fc_k_pad, 128)
    fc_b = jnp.pad(params["fcb"], (0, LANE - a)
                   ).astype(jnp.float32).reshape(1, LANE)
    return {"convs": convs, "fc_w": fc_w, "fc_b": fc_b}


# ---------------------------------------------------------------------------
# Forward pass (jitted): conv1 -> conv2 -> conv3 -> concat -> fc, all ReLU
# ---------------------------------------------------------------------------
def make_forward(sizes, n_actions, n_qstates):
    convh, convw = _conv_out_hw(sizes)
    fc_size = convw * convh * 64
    fc_k = fc_size + n_qstates
    fc_k_pad = _round_up(fc_k, LANE)

    @jax.jit
    def forward(prepped, input1, input2):
        n = input1.shape[0]
        # NCHW -> NHWC once, on the raw frames; bf16 MXU operands.
        x = jnp.transpose(input1, (0, 2, 3, 1)).astype(jnp.bfloat16)
        for (ksz, stride), real_c, (w, b) in zip(CONV_CFG, CONV_IN_C,
                                                 prepped["convs"]):
            patches, oh, ow = _im2col_nhwc(x, ksz, ksz, stride, real_c)
            y = linear_bias_relu(patches, w, b, out_dtype=jnp.bfloat16)
            x = y.reshape(n, oh, ow, LANE)
        flat = x[..., :64].reshape(n, -1)             # (n, fc_size), NHWC order
        q = input2.reshape(n, -1).astype(jnp.bfloat16)
        zpad = jnp.zeros((n, fc_k_pad - fc_k), jnp.bfloat16)
        combined = jnp.concatenate([flat, q, zpad], axis=1)   # (n, fc_k_pad)
        out = linear_bias_relu(combined, prepped["fc_w"], prepped["fc_b"],
                               out_dtype=jnp.float32)
        return out[:, :n_actions]                     # drop padded actions
    return forward


# ---------------------------------------------------------------------------
# Pure-JAX f32 reference (PyTorch semantics) for the correctness check
# ---------------------------------------------------------------------------
def forward_ref(params, input1, input2):
    dn = ("NCHW", "OIHW", "NCHW")

    def conv(x, w, b, s):
        y = lax.conv_general_dilated(x, w, (s, s), "VALID",
                                     dimension_numbers=dn)
        return jnp.maximum(y + b.reshape(1, -1, 1, 1), 0.0)

    c = conv(input1, params["w1"], params["b1"], 4)
    c = conv(c, params["w2"], params["b2"], 2)
    c = conv(c, params["w3"], params["b3"], 1)
    n = c.shape[0]
    combined = jnp.concatenate([c.reshape(n, -1), input2.reshape(n, -1)],
                               axis=1)
    return jnp.maximum(combined @ params["fcw"].T + params["fcb"], 0.0)


if __name__ == "__main__":
    # Non-square frames so an H/W mix-up would be caught:
    # 44x36 -> conv1 10x8 -> conv2 4x3 -> conv3 2x1, fc_size = 2*1*64 = 128.
    sizes = (44, 36)
    n_actions = 5
    n_qstates = 6
    batch = 2

    key = jax.random.PRNGKey(0)
    kp, kx, kq = jax.random.split(key, 3)
    params = init_params(kp, sizes, n_actions, n_qstates)
    prepped = prepare_params(params, sizes, n_actions, n_qstates)
    forward = make_forward(sizes, n_actions, n_qstates)

    x = jax.random.normal(kx, (batch, 4, sizes[0], sizes[1]), jnp.float32)
    q_idx = jax.random.randint(kq, (batch,), 0, n_qstates)
    q_onehot = jax.nn.one_hot(q_idx, n_qstates, dtype=jnp.float32)

    out = jax.block_until_ready(forward(prepped, x, q_onehot))
    ref = jax.block_until_ready(forward_ref(params, x, q_onehot))

    assert out.shape == (batch, n_actions)
    # bf16 matmul operands / bf16 inter-layer activations with f32
    # accumulation vs. the f32 reference: 3e-2 has a large margin.
    assert jnp.allclose(out, ref, atol=3e-2, rtol=3e-2), "mismatch vs reference"

    print("KERNEL_OK")
</pallas_src>

<mosaic_0001>
module attributes {stable_mosaic.version = 11 : i64} {
  func.func @_matmul_bias_relu_kernel(%arg0: i32, %arg1: memref<16x512xbf16, #tpu.memory_space<vmem>>, %arg2: memref<512x128xbf16, #tpu.memory_space<vmem>>, %arg3: memref<1x128xf32, #tpu.memory_space<vmem>>, %arg4: memref<16x128xbf16, #tpu.memory_space<vmem>>) attributes {dimension_semantics = [#tpu.dimension_semantics<parallel>], iteration_bounds = array<i64: 2>, scalar_prefetch = 0 : i64, scratch_operands = 0 : i64, tpu.core_type = #tpu.core_type<tc>, window_params = [{transform_indices = @transform_0, window_bounds = array<i64: 16, 512>}, {pipeline_mode = #tpu.pipeline_mode<synchronous>, transform_indices = @transform_1, window_bounds = array<i64: 512, 128>}, {pipeline_mode = #tpu.pipeline_mode<synchronous>, transform_indices = @transform_2, window_bounds = array<i64: 1, 128>}, {transform_indices = @transform_3, window_bounds = array<i64: 16, 128>}]} {
    %c0 = arith.constant 0 : index
    %c0_0 = arith.constant 0 : index
    %0 = vector.load %arg1[%c0, %c0_0] : memref<16x512xbf16, #tpu.memory_space<vmem>>, vector<16x512xbf16>
    %c0_1 = arith.constant 0 : index
    %c0_2 = arith.constant 0 : index
    %1 = vector.load %arg2[%c0_1, %c0_2] : memref<512x128xbf16, #tpu.memory_space<vmem>>, vector<512x128xbf16>
    %cst = arith.constant dense<0.000000e+00> : vector<16x128xf32>
    %2 = tpu.matmul %0, %1, %cst {dimension_numbers = #tpu.dot_dimension_numbers<[1], [0], [0], [1], [0, 0, 1, 1], [], []>} : vector<16x512xbf16>, vector<512x128xbf16>, vector<16x128xf32> -> vector<16x128xf32>
    %c0_3 = arith.constant 0 : index
    %c0_4 = arith.constant 0 : index
    %3 = vector.load %arg3[%c0_3, %c0_4] : memref<1x128xf32, #tpu.memory_space<vmem>>, vector<1x128xf32>
    %4 = vector.broadcast %3 : vector<1x128xf32> to vector<16x128xf32>
    %5 = arith.addf %2, %4 : vector<16x128xf32>
    %cst_5 = arith.constant 0.000000e+00 : f32
    %6 = vector.broadcast %cst_5 : f32 to vector<16x128xf32>
    %7 = arith.maximumf %5, %6 : vector<16x128xf32>
    %8 = arith.truncf %7 : vector<16x128xf32> to vector<16x128xbf16>
    %c0_6 = arith.constant 0 : index
    %c0_7 = arith.constant 0 : index
    %9 = vector.load %arg4[%c0_6, %c0_7] : memref<16x128xbf16, #tpu.memory_space<vmem>>, vector<16x128xbf16>
    tpu.vector_store %arg4[%c0_6, %c0_7], %8 {strides = array<i32>} : memref<16x128xbf16, #tpu.memory_space<vmem>>, vector<16x128xbf16>,
    return
  }
  func.func @transform_0(%arg0: i32) -> (i32, i32) {
    %c0_i32 = arith.constant 0 : i32
    %c0_i32_0 = arith.constant 0 : i32
    return %arg0, %c0_i32 : i32, i32
  }
  func.func @transform_1(%arg0: i32) -> (i32, i32) {
    %c0_i32 = arith.constant 0 : i32
    %c0_i32_0 = arith.constant 0 : i32
    %c0_i32_1 = arith.constant 0 : i32
    return %c0_i32, %c0_i32_0 : i32, i32
  }
  func.func @transform_2(%arg0: i32) -> (i32, i32) {
    %c0_i32 = arith.constant 0 : i32
    %c0_i32_0 = arith.constant 0 : i32
    %c0_i32_1 = arith.constant 0 : i32
    return %c0_i32, %c0_i32_0 : i32, i32
  }
  func.func @transform_3(%arg0: i32) -> (i32, i32) {
    %c0_i32 = arith.constant 0 : i32
    %c0_i32_0 = arith.constant 0 : i32
    return %arg0, %c0_i32 : i32, i32
  }
}

module attributes {stable_mosaic.version = 11 : i64} {
  func.func @_matmul_bias_relu_kernel(%arg0: i32, %arg1: memref<80x256xbf16, #tpu.memory_space<vmem>>, %arg2: memref<256x128xbf16, #tpu.memory_space<vmem>>, %arg3: memref<1x128xf32, #tpu.memory_space<vmem>>, %arg4: memref<80x128xbf16, #tpu.memory_space<vmem>>) attributes {dimension_semantics = [#tpu.dimension_semantics<parallel>], iteration_bounds = array<i64: 2>, scalar_prefetch = 0 : i64, scratch_operands = 0 : i64, tpu.core_type = #tpu.core_type<tc>, window_params = [{transform_indices = @transform_0, window_bounds = array<i64: 80, 256>}, {pipeline_mode = #tpu.pipeline_mode<synchronous>, transform_indices = @transform_1, window_bounds = array<i64: 256, 128>}, {pipeline_mode = #tpu.pipeline_mode<synchronous>, transform_indices = @transform_2, window_bounds = array<i64: 1, 128>}, {transform_indices = @transform_3, window_bounds = array<i64: 80, 128>}]} {
    %c0 = arith.constant 0 : index
    %c0_0 = arith.constant 0 : index
    %0 = vector.load %arg1[%c0, %c0_0] : memref<80x256xbf16, #tpu.memory_space<vmem>>, vector<80x256xbf16>
    %c0_1 = arith.constant 0 : index
    %c0_2 = arith.constant 0 : index
    %1 = vector.load %arg2[%c0_1, %c0_2] : memref<256x128xbf16, #tpu.memory_space<vmem>>, vector<256x128xbf16>
    %cst = arith.constant dense<0.000000e+00> : vector<80x128xf32>
    %2 = tpu.matmul %0, %1, %cst {dimension_numbers = #tpu.dot_dimension_numbers<[1], [0], [0], [1], [0, 0, 1, 1], [], []>} : vector<80x256xbf16>, vector<256x128xbf16>, vector<80x128xf32> -> vector<80x128xf32>
    %c0_3 = arith.constant 0 : index
    %c0_4 = arith.constant 0 : index
    %3 = vector.load %arg3[%c0_3, %c0_4] : memref<1x128xf32, #tpu.memory_space<vmem>>, vector<1x128xf32>
    %4 = vector.broadcast %3 : vector<1x128xf32> to vector<80x128xf32>
    %5 = arith.addf %2, %4 : vector<80x128xf32>
    %cst_5 = arith.constant 0.000000e+00 : f32
    %6 = vector.broadcast %cst_5 : f32 to vector<80x128xf32>
    %7 = arith.maximumf %5, %6 : vector<80x128xf32>
    %8 = arith.truncf %7 : vector<80x128xf32> to vector<80x128xbf16>
    %c0_6 = arith.constant 0 : index
    %c0_7 = arith.constant 0 : index
    %9 = vector.load %arg4[%c0_6, %c0_7] : memref<80x128xbf16, #tpu.memory_space<vmem>>, vector<80x128xbf16>
    tpu.vector_store %arg4[%c0_6, %c0_7], %8 {strides = array<i32>} : memref<80x128xbf16, #tpu.memory_space<vmem>>, vector<80x128xbf16>,
    return
  }
  func.func @transform_0(%arg0: i32) -> (i32, i32) {
    %c0_i32 = arith.constant 0 : i32
    %c0_i32_0 = arith.constant 0 : i32
    return %arg0, %c0_i32 : i32, i32
  }
  func.func @transform_1(%arg0: i32) -> (i32, i32) {
    %c0_i32 = arith.constant 0 : i32
    %c0_i32_0 = arith.constant 0 : i32
    %c0_i32_1 = arith.constant 0 : i32
    return %c0_i32, %c0_i32_0 : i32, i32
  }
  func.func @transform_2(%arg0: i32) -> (i32, i32) {
    %c0_i32 = arith.constant 0 : i32
    %c0_i32_0 = arith.constant 0 : i32
    %c0_i32_1 = arith.constant 0 : i32
    return %c0_i32, %c0_i32_0 : i32, i32
  }
  func.func @transform_3(%arg0: i32) -> (i32, i32) {
    %c0_i32 = arith.constant 0 : i32
    %c0_i32_0 = arith.constant 0 : i32
    return %arg0, %c0_i32 : i32, i32
  }
}

module attributes {stable_mosaic.version = 11 : i64} {
  func.func @_matmul_bias_relu_kernel(%arg0: i32, %arg1: memref<16x576xbf16, #tpu.memory_space<vmem>>, %arg2: memref<576x128xbf16, #tpu.memory_space<vmem>>, %arg3: memref<1x128xf32, #tpu.memory_space<vmem>>, %arg4: memref<16x128xbf16, #tpu.memory_space<vmem>>) attributes {dimension_semantics = [#tpu.dimension_semantics<parallel>], iteration_bounds = array<i64: 1>, scalar_prefetch = 0 : i64, scratch_operands = 0 : i64, tpu.core_type = #tpu.core_type<tc>, window_params = [{transform_indices = @transform_0, window_bounds = array<i64: 16, 576>}, {pipeline_mode = #tpu.pipeline_mode<synchronous>, transform_indices = @transform_1, window_bounds = array<i64: 576, 128>}, {pipeline_mode = #tpu.pipeline_mode<synchronous>, transform_indices = @transform_2, window_bounds = array<i64: 1, 128>}, {transform_indices = @transform_3, window_bounds = array<i64: 16, 128>}]} {
    %c0 = arith.constant 0 : index
    %c0_0 = arith.constant 0 : index
    %0 = vector.load %arg1[%c0, %c0_0] : memref<16x576xbf16, #tpu.memory_space<vmem>>, vector<16x576xbf16>
    %c0_1 = arith.constant 0 : index
    %c0_2 = arith.constant 0 : index
    %1 = vector.load %arg2[%c0_1, %c0_2] : memref<576x128xbf16, #tpu.memory_space<vmem>>, vector<576x128xbf16>
    %cst = arith.constant dense<0.000000e+00> : vector<16x128xf32>
    %2 = tpu.matmul %0, %1, %cst {dimension_numbers = #tpu.dot_dimension_numbers<[1], [0], [0], [1], [0, 0, 1, 1], [], []>} : vector<16x576xbf16>, vector<576x128xbf16>, vector<16x128xf32> -> vector<16x128xf32>
    %c0_3 = arith.constant 0 : index
    %c0_4 = arith.constant 0 : index
    %3 = vector.load %arg3[%c0_3, %c0_4] : memref<1x128xf32, #tpu.memory_space<vmem>>, vector<1x128xf32>
    %4 = vector.broadcast %3 : vector<1x128xf32> to vector<16x128xf32>
    %5 = arith.addf %2, %4 : vector<16x128xf32>
    %cst_5 = arith.constant 0.000000e+00 : f32
    %6 = vector.broadcast %cst_5 : f32 to vector<16x128xf32>
    %7 = arith.maximumf %5, %6 : vector<16x128xf32>
    %8 = arith.truncf %7 : vector<16x128xf32> to vector<16x128xbf16>
    %c0_6 = arith.constant 0 : index
    %c0_7 = arith.constant 0 : index
    %9 = vector.load %arg4[%c0_6, %c0_7] : memref<16x128xbf16, #tpu.memory_space<vmem>>, vector<16x128xbf16>
    tpu.vector_store %arg4[%c0_6, %c0_7], %8 {strides = array<i32>} : memref<16x128xbf16, #tpu.memory_space<vmem>>, vector<16x128xbf16>,
    return
  }
  func.func @transform_0(%arg0: i32) -> (i32, i32) {
    %c0_i32 = arith.constant 0 : i32
    %c0_i32_0 = arith.constant 0 : i32
    return %arg0, %c0_i32 : i32, i32
  }
  func.func @transform_1(%arg0: i32) -> (i32, i32) {
    %c0_i32 = arith.constant 0 : i32
    %c0_i32_0 = arith.constant 0 : i32
    %c0_i32_1 = arith.constant 0 : i32
    return %c0_i32, %c0_i32_0 : i32, i32
  }
  func.func @transform_2(%arg0: i32) -> (i32, i32) {
    %c0_i32 = arith.constant 0 : i32
    %c0_i32_0 = arith.constant 0 : i32
    %c0_i32_1 = arith.constant 0 : i32
    return %c0_i32, %c0_i32_0 : i32, i32
  }
  func.func @transform_3(%arg0: i32) -> (i32, i32) {
    %c0_i32 = arith.constant 0 : i32
    %c0_i32_0 = arith.constant 0 : i32
    return %arg0, %c0_i32 : i32, i32
  }
}

module attributes {stable_mosaic.version = 11 : i64} {
  func.func @_matmul_bias_relu_kernel(%arg0: i32, %arg1: memref<16x256xbf16, #tpu.memory_space<vmem>>, %arg2: memref<256x128xbf16, #tpu.memory_space<vmem>>, %arg3: memref<1x128xf32, #tpu.memory_space<vmem>>, %arg4: memref<16x128xf32, #tpu.memory_space<vmem>>) attributes {dimension_semantics = [#tpu.dimension_semantics<parallel>], iteration_bounds = array<i64: 1>, scalar_prefetch = 0 : i64, scratch_operands = 0 : i64, tpu.core_type = #tpu.core_type<tc>, window_params = [{transform_indices = @transform_0, window_bounds = array<i64: 16, 256>}, {pipeline_mode = #tpu.pipeline_mode<synchronous>, transform_indices = @transform_1, window_bounds = array<i64: 256, 128>}, {pipeline_mode = #tpu.pipeline_mode<synchronous>, transform_indices = @transform_2, window_bounds = array<i64: 1, 128>}, {transform_indices = @transform_3, window_bounds = array<i64: 16, 128>}]} {
    %c0 = arith.constant 0 : index
    %c0_0 = arith.constant 0 : index
    %0 = vector.load %arg1[%c0, %c0_0] : memref<16x256xbf16, #tpu.memory_space<vmem>>, vector<16x256xbf16>
    %c0_1 = arith.constant 0 : index
    %c0_2 = arith.constant 0 : index
    %1 = vector.load %arg2[%c0_1, %c0_2] : memref<256x128xbf16, #tpu.memory_space<vmem>>, vector<256x128xbf16>
    %cst = arith.constant dense<0.000000e+00> : vector<16x128xf32>
    %2 = tpu.matmul %0, %1, %cst {dimension_numbers = #tpu.dot_dimension_numbers<[1], [0], [0], [1], [0, 0, 1, 1], [], []>} : vector<16x256xbf16>, vector<256x128xbf16>, vector<16x128xf32> -> vector<16x128xf32>
    %c0_3 = arith.constant 0 : index
    %c0_4 = arith.constant 0 : index
    %3 = vector.load %arg3[%c0_3, %c0_4] : memref<1x128xf32, #tpu.memory_space<vmem>>, vector<1x128xf32>
    %4 = vector.broadcast %3 : vector<1x128xf32> to vector<16x128xf32>
    %5 = arith.addf %2, %4 : vector<16x128xf32>
    %cst_5 = arith.constant 0.000000e+00 : f32
    %6 = vector.broadcast %cst_5 : f32 to vector<16x128xf32>
    %7 = arith.maximumf %5, %6 : vector<16x128xf32>
    %c0_6 = arith.constant 0 : index
    %c0_7 = arith.constant 0 : index
    %8 = vector.load %arg4[%c0_6, %c0_7] : memref<16x128xf32, #tpu.memory_space<vmem>>, vector<16x128xf32>
    tpu.vector_store %arg4[%c0_6, %c0_7], %7 {strides = array<i32>} : memref<16x128xf32, #tpu.memory_space<vmem>>, vector<16x128xf32>,
    return
  }
  func.func @transform_0(%arg0: i32) -> (i32, i32) {
    %c0_i32 = arith.constant 0 : i32
    %c0_i32_0 = arith.constant 0 : i32
    return %arg0, %c0_i32 : i32, i32
  }
  func.func @transform_1(%arg0: i32) -> (i32, i32) {
    %c0_i32 = arith.constant 0 : i32
    %c0_i32_0 = arith.constant 0 : i32
    %c0_i32_1 = arith.constant 0 : i32
    return %c0_i32, %c0_i32_0 : i32, i32
  }
  func.func @transform_2(%arg0: i32) -> (i32, i32) {
    %c0_i32 = arith.constant 0 : i32
    %c0_i32_0 = arith.constant 0 : i32
    %c0_i32_1 = arith.constant 0 : i32
    return %c0_i32, %c0_i32_0 : i32, i32
  }
  func.func @transform_3(%arg0: i32) -> (i32, i32) {
    %c0_i32 = arith.constant 0 : i32
    %c0_i32_0 = arith.constant 0 : i32
    return %arg0, %c0_i32 : i32, i32
  }
}

</mosaic_0001>

<llo_original>
// kernel: forward.5
$region0: #{forward.5}
  #allocation0 [shape = 'u32[]', space=smem, size = 0x4, offset = 0x4, fixed_abs, tag = 'smem constant byte address 0x4 - core index']
  #allocation1 [shape = 'u32[144,128]{1,0:T(1,128)}', space=vmem, size = 0x12000, scoped, tag = 'internal scratch']
  %s0 = inlined_call_operand.vmem [shape: bf16[24,512], index: 0, kind: input, shape index: {}]
  %s1 = inlined_call_operand.vmem [shape: bf16[512,128], index: 1, kind: input, shape index: {}]
  %s2 = inlined_call_operand.vmem [shape: f32[1,128], index: 2, kind: input, shape index: {}]
  %s3 = inlined_call_operand.vmem [shape: bf16[24,128], index: 3, kind: output, shape index: {}]
  %s4 = sld [smem:[#allocation0]]
  $region89: #{forward.5} parent=0
    _
  %s6 = ssub.s32 1, %s4
  %s7 = scalar_select 0, %s6, %s4
  $region1: #{forward.5} parent=0
    #allocation2 [shape = 'u8[8192]{0}', space=vmem, size = 0x2000, scoped, tag = 'output window, operand 0']
    loop: start=0, step=1, limit=4
    $region2: #{forward.5} parent=1 // loop_pre_header
      _
    $region3: #{forward.5} parent=1 // loop_header
      %s9 = sphi 0, %s13
      %p10 = scmp.ge.s32.totalorder %s9, 4
      %s19 = sphi 0, %s21
      %s22 = sphi 0, %s19
      %s23 = sphi 0, %s22
      %s39 = sphi 0, %s23
      %s43 = sphi 0, %s43
      %s45 = sphi 0, %s43
      %s46 = sphi 0, %s45
      %s60 = sphi 0, %s46
      %s64 = sphi 0, %s64
      %s66 = sphi 0, %s64
      %s67 = sphi 0, %s66
      %s81 = sphi 0, %s67
      %s87 = sphi 0, %s89
      %s90 = sphi 0, %s87
      %s91 = sphi 0, %s90
      %s107 = sphi 0, %s91
    $region4: #{forward.5} parent=1 // loop_header_branch
      %12 = sbr.rel (%p10) target = $region8
    $region5: #{forward.5} parent=1 // loop_body
      %s14 = ssub.s32 %s9, 1
      %s15 = ssub.s32 %s9, 2
      %s16 = sadd.s32 %s9, 1
      %s17 = ssub.s32 %s9, %s16
      %p18 = scmp.eq.s32.totalorder %s17, 0
      %s20 = sadd.s32 %s19, 1
      %s21 = scalar_select %p18, %s19, %s20
      %p24 = pneg %p18
      %p25 = scmp.eq.s32.totalorder %s9, 1
      %p26 = por %p24, %p25
      %p27 = scmp.ne.s32.totalorder %s19, %s22
      %p28 = scmp.eq.s32.totalorder %s9, 0
      %p29 = por %p27, %p28
      %p30 = scmp.ne.s32.totalorder %s19, %s22
      %p31 = scmp.eq.s32.totalorder %s14, 1
      %p32 = por %p30, %p31
      %p33 = scmp.ne.s32.totalorder %s22, %s23
      %p34 = scmp.eq.s32.totalorder %s14, 0
      %p35 = por %p33, %p34
      %p36 = scmp.ne.s32.totalorder %s22, %s23
      %p37 = scmp.eq.s32.totalorder %s15, 1
      %p38 = por %p36, %p37
      %p40 = scmp.ne.s32.totalorder %s23, %s39
      %p41 = scmp.eq.s32.totalorder %s15, 0
      %p42 = por %p40, %p41
      %s44 = sadd.s32 %s43, 1
      %p47 = scmp.eq.s32.totalorder %s9, 1
      %p48 = scmp.ne.s32.totalorder %s43, %s45
      %p49 = scmp.eq.s32.totalorder %s9, 0
      %p50 = por %p48, %p49
      %p51 = scmp.ne.s32.totalorder %s43, %s45
      %p52 = scmp.eq.s32.totalorder %s14, 1
      %p53 = por %p51, %p52
      %p54 = scmp.ne.s32.totalorder %s45, %s46
      %p55 = scmp.eq.s32.totalorder %s14, 0
      %p56 = por %p54, %p55
      %p57 = scmp.ne.s32.totalorder %s45, %s46
      %p58 = scmp.eq.s32.totalorder %s15, 1
      %p59 = por %p57, %p58
      %p61 = scmp.ne.s32.totalorder %s46, %s60
      %p62 = scmp.eq.s32.totalorder %s15, 0
      %p63 = por %p61, %p62
      %s65 = sadd.s32 %s64, 1
      %p68 = scmp.eq.s32.totalorder %s9, 1
      %p69 = scmp.ne.s32.totalorder %s64, %s66
      %p70 = scmp.eq.s32.totalorder %s9, 0
      %p71 = por %p69, %p70
      %p72 = scmp.ne.s32.totalorder %s64, %s66
      %p73 = scmp.eq.s32.totalorder %s14, 1
      %p74 = por %p72, %p73
      %p75 = scmp.ne.s32.totalorder %s66, %s67
      %p76 = scmp.eq.s32.totalorder %s14, 0
      %p77 = por %p75, %p76
      %p78 = scmp.ne.s32.totalorder %s66, %s67
      %p79 = scmp.eq.s32.totalorder %s15, 1
      %p80 = por %p78, %p79
      %p82 = scmp.ne.s32.totalorder %s67, %s81
      %p83 = scmp.eq.s32.totalorder %s15, 0
      %p84 = por %p82, %p83
      %s85 = ssub.s32 %s9, %s16
      %p86 = scmp.eq.s32.totalorder %s85, 0
      %s88 = sadd.s32 %s87, 1
      %s89 = scalar_select %p86, %s87, %s88
      %p92 = pneg %p86
      %p93 = scmp.eq.s32.totalorder %s9, 1
      %p94 = por %p92, %p93
      %p95 = scmp.ne.s32.totalorder %s87, %s90
      %p96 = scmp.eq.s32.totalorder %s9, 0
      %p97 = por %p95, %p96
      %p98 = scmp.ne.s32.totalorder %s87, %s90
      %p99 = scmp.eq.s32.totalorder %s14, 1
      %p100 = por %p98, %p99
      %p101 = scmp.ne.s32.totalorder %s90, %s91
      %p102 = scmp.eq.s32.totalorder %s14, 0
      %p103 = por %p101, %p102
      %p104 = scmp.ne.s32.totalorder %s90, %s91
      %p105 = scmp.eq.s32.totalorder %s15, 1
      %p106 = por %p104, %p105
      %p108 = scmp.ne.s32.totalorder %s91, %s107
      %p109 = scmp.eq.s32.totalorder %s15, 0
      %p110 = por %p108, %p109
      %p111 = scmp.le.s32.totalorder 1, %s9
      %p112 = scmp.lt.s32.totalorder %s9, 3
      %p113 = pnand %p111, %p112
      %p114 = pneg %p113
      // Predicated region
      $region9: #{forward.5} parent=5 // pred_check
        _
      $region10: #{forward.5} parent=5 // pred_check_branch
        %116 = sbr.rel (%p113) target = $region12
      $region11: #{forward.5} parent=5 // pred_region
        %s117 = ssub.s32 %s9, 1
        // Predicated region
        $region13: #{forward.5} parent=11 // pred_check
          %p118 = pneg %p56
        $region14: #{forward.5} parent=11 // pred_check_branch
          %120 = sbr.rel (%p118) target = $region16
        $region15: #{forward.5} parent=11 // pred_region
          _
        $region16: #{forward.5} parent=11 // pred_fallthru
          _
        // Predicated region
        $region17: #{forward.5} parent=11 // pred_check
          %p121 = pneg %p77
        $region18: #{forward.5} parent=11 // pred_check_branch
          %123 = sbr.rel (%p121) target = $region20
        $region19: #{forward.5} parent=11 // pred_region
          _
        $region20: #{forward.5} parent=11 // pred_fallthru
          _
      $region12: #{forward.5} parent=5 // pred_fallthru
        _
      %p124 = scmp.lt.s32.totalorder %s9, 2
      // Predicated region
      $region21: #{forward.5} parent=5 // pred_check
        %p125 = pneg %p124
      $region22: #{forward.5} parent=5 // pred_check_branch
        %127 = sbr.rel (%p125) target = $region24
      $region23: #{forward.5} parent=5 // pred_region
        // Predicated region
        $region25: #{forward.5} parent=23 // pred_check
          %p128 = pneg %p29
        $region26: #{forward.5} parent=23 // pred_check_branch
          %130 = sbr.rel (%p128) target = $region28
        $region27: #{forward.5} parent=23 // pred_region
          %s131 = smul.u32 2, %s9
          %s132 = ssub.s32 3, %s131
          %p133 = scmp.lt.s32.totalorder %s132, 2
          %s134 = scalar_select %p133, %s132, 2
          %s135 = smul.u32 64, %s134
          %s136 = smul.u32 %s135, 4
          %p137 = scmp.lt.s32.totalorder %s131, 2
          %s138 = scalar_select %p137, %s131, 2
          %s139 = smul.addr %s138, 4
          %s140 = smul.addr %s139, 4
          %s141 = scalar_lea.vmem %s0, %s140
          %s142 = smul.u32 2, %s9
          %s143 = ssub.s32 3, %s142
          %p144 = scmp.lt.s32.totalorder %s143, 2
          %s145 = scalar_select %p144, %s143, 2
          %s146 = smul.u32 64, %s145
          %s147 = smul.u32 %s146, 4
        $region28: #{forward.5} parent=23 // pred_fallthru
          _
      $region24: #{forward.5} parent=5 // pred_fallthru
        _
      %p148 = scmp.le.s32.totalorder 1, %s9
      %p149 = scmp.lt.s32.totalorder %s9, 3
      %p150 = pnand %p148, %p149
      %p151 = pneg %p150
      // Predicated region
      $region29: #{forward.5} parent=5 // pred_check
        _
      $region30: #{forward.5} parent=5 // pred_check_branch
        %153 = sbr.rel (%p150) target = $region32
      $region31: #{forward.5} parent=5 // pred_region
        %s154 = ssub.s32 %s9, 1
        %s155 = smul.u32 2, %s14
        %s156 = ssub.s32 3, %s155
        %p157 = scmp.lt.s32.totalorder %s156, 2
        %s158 = scalar_select %p157, %s156, 2
        %s159 = smul.u32 64, %s158
        %s160 = smul.u32 %s159, 4
        %p161 = scmp.lt.s32.totalorder %s155, 2
        %s162 = scalar_select %p161, %s155, 2
        %s163 = smul.addr %s162, 4
        %s164 = smul.addr %s163, 4
        %s165 = scalar_lea.vmem %s0, %s164
        %p166 = pneg %p35
        %p167 = pneg %p32
        %p168 = pneg %p56
        %p169 = pneg %p53
        %p170 = pneg %p77
        %p171 = pneg %p74
        %p172 = pneg %p103
        %p173 = pneg %p100
        %s174 = sand.u32 %s90, 1
        %s175 = sand.u32 %s90, 1
        %s176 = smul.addr %s175, 8
        %s177 = scalar_lea.vmem [#allocation2], %s176
        %s178 = smul.u32 2, %s14
        %s179 = ssub.s32 3, %s178
        %p180 = scmp.lt.s32.totalorder %s179, 2
        %s181 = scalar_select %p180, %s179, 2
        %s182 = smul.u32 64, %s181
        %s183 = smul.u32 %s182, 4
        %p184 = scmp.lt.s32.totalorder %s178, 2
        %s185 = scalar_select %p184, %s178, 2
        %s186 = smul.addr %s185, 4
        %s187 = smul.addr %s186, 4
        %s188 = scalar_lea.vmem %s0, %s187
        %s189 = smul.u32 2, %s14
        %s190 = ssub.s32 3, %s189
        %p191 = scmp.lt.s32.totalorder %s190, 2
        %s192 = scalar_select %p191, %s190, 2
        %s193 = smul.u32 64, %s192
        %s194 = smul.u32 %s193, 4
        %s195 = smul.u32 2, %s14
        %s196 = ssub.s32 3, %s195
        %p197 = scmp.lt.s32.totalorder %s196, 2
        %s198 = scalar_select %p197, %s196, 2
        %s199 = smul.u32 64, %s198
        %v201 = vld [vmem:[%s188] sm:$0xff]
        %v202 = vld [vmem:[%s188 + $0x8] sm:$0xff]
        %v203 = vld [vmem:[%s188 + $0x10] sm:$0xff]
        %v204 = vld [vmem:[%s188 + $0x18] sm:$0xff]
        %v205 = vld [vmem:[%s1] sm:$0xf]
        %v206 = vld [vmem:[%s1 + $0x4] sm:$0xf]
        %v207 = vld [vmem:[%s1 + $0x8] sm:$0xf]
        %v208 = vld [vmem:[%s1 + $0xc] sm:$0xf]
        %v209 = vld [vmem:[%s1 + $0x10] sm:$0xf]
        %v210 = vld [vmem:[%s1 + $0x14] sm:$0xf]
        %v211 = vld [vmem:[%s1 + $0x18] sm:$0xf]
        %v212 = vld [vmem:[%s1 + $0x1c] sm:$0xf]
        %v213 = vld [vmem:[%s1 + $0x20] sm:$0xf]
        %v214 = vld [vmem:[%s1 + $0x24] sm:$0xf]
        %v215 = vld [vmem:[%s1 + $0x28] sm:$0xf]
        %v216 = vld [vmem:[%s1 + $0x2c] sm:$0xf]
        %v217 = vld [vmem:[%s1 + $0x30] sm:$0xf]
        %v218 = vld [vmem:[%s1 + $0x34] sm:$0xf]
        %v219 = vld [vmem:[%s1 + $0x38] sm:$0xf]
        %v220 = vld [vmem:[%s1 + $0x3c] sm:$0xf]
        %v221 = vld [vmem:[%s1 + $0x40] sm:$0xf]
        %v222 = vld [vmem:[%s1 + $0x44] sm:$0xf]
        %v223 = vld [vmem:[%s1 + $0x48] sm:$0xf]
        %v224 = vld [vmem:[%s1 + $0x4c] sm:$0xf]
        %v225 = vld [vmem:[%s1 + $0x50] sm:$0xf]
        %v226 = vld [vmem:[%s1 + $0x54] sm:$0xf]
        %v227 = vld [vmem:[%s1 + $0x58] sm:$0xf]
        %v228 = vld [vmem:[%s1 + $0x5c] sm:$0xf]
        %v229 = vld [vmem:[%s1 + $0x60] sm:$0xf]
        %v230 = vld [vmem:[%s1 + $0x64] sm:$0xf]
        %v231 = vld [vmem:[%s1 + $0x68] sm:$0xf]
        %v232 = vld [vmem:[%s1 + $0x6c] sm:$0xf]
        %v233 = vld [vmem:[%s1 + $0x70] sm:$0xf]
        %v234 = vld [vmem:[%s1 + $0x74] sm:$0xf]
        %v235 = vld [vmem:[%s1 + $0x78] sm:$0xf]
        %v236 = vld [vmem:[%s1 + $0x7c] sm:$0xf]
        %v237 = vld [vmem:[%s1 + $0x80] sm:$0xf]
        %v238 = vld [vmem:[%s1 + $0x84] sm:$0xf]
        %v239 = vld [vmem:[%s1 + $0x88] sm:$0xf]
        %v240 = vld [vmem:[%s1 + $0x8c] sm:$0xf]
        %v241 = vld [vmem:[%s1 + $0x90] sm:$0xf]
        %v242 = vld [vmem:[%s1 + $0x94] sm:$0xf]
        %v243 = vld [vmem:[%s1 + $0x98] sm:$0xf]
        %v244 = vld [vmem:[%s1 + $0x9c] sm:$0xf]
        %v245 = vld [vmem:[%s1 + $0xa0] sm:$0xf]
        %v246 = vld [vmem:[%s1 + $0xa4] sm:$0xf]
        %v247 = vld [vmem:[%s1 + $0xa8] sm:$0xf]
        %v248 = vld [vmem:[%s1 + $0xac] sm:$0xf]
        %v249 = vld [vmem:[%s1 + $0xb0] sm:$0xf]
        %v250 = vld [vmem:[%s1 + $0xb4] sm:$0xf]
        %v251 = vld [vmem:[%s1 + $0xb8] sm:$0xf]
        %v252 = vld [vmem:[%s1 + $0xbc] sm:$0xf]
        %v253 = vld [vmem:[%s1 + $0xc0] sm:$0xf]
        %v254 = vld [vmem:[%s1 + $0xc4] sm:$0xf]
        %v255 = vld [vmem:[%s1 + $0xc8] sm:$0xf]
        %v256 = vld [vmem:[%s1 + $0xcc] sm:$0xf]
        %v257 = vld [vmem:[%s1 + $0xd0] sm:$0xf]
        %v258 = vld [vmem:[%s1 + $0xd4] sm:$0xf]
        %v259 = vld [vmem:[%s1 + $0xd8] sm:$0xf]
        %v260 = vld [vmem:[%s1 + $0xdc] sm:$0xf]
        %v261 = vld [vmem:[%s1 + $0xe0] sm:$0xf]
        %v262 = vld [vmem:[%s1 + $0xe4] sm:$0xf]
        %v263 = vld [vmem:[%s1 + $0xe8] sm:$0xf]
        %v264 = vld [vmem:[%s1 + $0xec] sm:$0xf]
        %v265 = vld [vmem:[%s1 + $0xf0] sm:$0xf]
        %v266 = vld [vmem:[%s1 + $0xf4] sm:$0xf]
        %v267 = vld [vmem:[%s1 + $0xf8] sm:$0xf]
        %v268 = vld [vmem:[%s1 + $0xfc] sm:$0xf]
        %v269 = vld [vmem:[%s2] sm:$0x1]
        %v271 = vlaneseq
        %v272 = vshrl.u32 %v271, 7
        %v273 = vsub.s32 0, %v272
        %v274 = vrot.slane %v269, %v273
        %v280 = vunpack.c.l.b16 %v201
        %v281 = vunpack.c.h.b16 %v201
        %v282 = vunpack.c.l.b16 %v202
        %v283 = vunpack.c.h.b16 %v202
        %v284 = vunpack.c.l.b16 %v203
        %v285 = vunpack.c.h.b16 %v203
        %v286 = vunpack.c.l.b16 %v204
        %v287 = vunpack.c.h.b16 %v204
        %v288 = vpack.c.b16 %v284, %v280
        %v289 = vpack.c.b16 %v285, %v281
        %v290 = vpack.c.b16 %v286, %v282
        %v291 = vpack.c.b16 %v287, %v283
        %v360 = vunpack.c.l.b16 %v205
        %v361 = vunpack.c.l.b16 %v206
        %v362 = vunpack.c.l.b16 %v207
        %v363 = vunpack.c.l.b16 %v208
        %v364 = vunpack.c.l.b16 %v209
        %v365 = vunpack.c.l.b16 %v210
        %v366 = vunpack.c.l.b16 %v211
        %v367 = vunpack.c.l.b16 %v212
        %v368 = vunpack.c.l.b16 %v213
        %v369 = vunpack.c.l.b16 %v214
        %v370 = vunpack.c.l.b16 %v215
        %v371 = vunpack.c.l.b16 %v216
        %v372 = vunpack.c.l.b16 %v217
        %v373 = vunpack.c.l.b16 %v218
        %v374 = vunpack.c.l.b16 %v219
        %v375 = vunpack.c.l.b16 %v220
        %v376 = vunpack.c.l.b16 %v221
        %v377 = vunpack.c.l.b16 %v222
        %v378 = vunpack.c.l.b16 %v223
        %v379 = vunpack.c.l.b16 %v224
        %v380 = vunpack.c.l.b16 %v225
        %v381 = vunpack.c.l.b16 %v226
        %v382 = vunpack.c.l.b16 %v227
        %v383 = vunpack.c.l.b16 %v228
        %v384 = vunpack.c.l.b16 %v229
        %v385 = vunpack.c.l.b16 %v230
        %v386 = vunpack.c.l.b16 %v231
        %v387 = vunpack.c.l.b16 %v232
        %v388 = vunpack.c.l.b16 %v233
        %v389 = vunpack.c.l.b16 %v234
        %v390 = vunpack.c.l.b16 %v235
        %v391 = vunpack.c.l.b16 %v236
        %v392 = vunpack.c.l.b16 %v237
        %v393 = vunpack.c.l.b16 %v238
        %v394 = vunpack.c.l.b16 %v239
        %v395 = vunpack.c.l.b16 %v240
        %v396 = vunpack.c.l.b16 %v241
        %v397 = vunpack.c.l.b16 %v242
        %v398 = vunpack.c.l.b16 %v243
        %v399 = vunpack.c.l.b16 %v244
        %v400 = vunpack.c.l.b16 %v245
        %v401 = vunpack.c.l.b16 %v246
        %v402 = vunpack.c.l.b16 %v247
        %v403 = vunpack.c.l.b16 %v248
        %v404 = vunpack.c.l.b16 %v249
        %v405 = vunpack.c.l.b16 %v250
        %v406 = vunpack.c.l.b16 %v251
        %v407 = vunpack.c.l.b16 %v252
        %v408 = vunpack.c.l.b16 %v253
        %v409 = vunpack.c.l.b16 %v254
        %v410 = vunpack.c.l.b16 %v255
        %v411 = vunpack.c.l.b16 %v256
        %v412 = vunpack.c.l.b16 %v257
        %v413 = vunpack.c.l.b16 %v258
        %v414 = vunpack.c.l.b16 %v259
        %v415 = vunpack.c.l.b16 %v260
        %v416 = vunpack.c.l.b16 %v261
        %v417 = vunpack.c.l.b16 %v262
        %v418 = vunpack.c.l.b16 %v263
        %v419 = vunpack.c.l.b16 %v264
        %v420 = vunpack.c.l.b16 %v265
        %v421 = vunpack.c.l.b16 %v266
        %v422 = vunpack.c.l.b16 %v267
        %v423 = vunpack.c.l.b16 %v268
        %v424 = vpack.c.b16 %v361, %v360
        %v425 = vpack.c.b16 %v363, %v362
        %v426 = vpack.c.b16 %v365, %v364
        %v427 = vpack.c.b16 %v367, %v366
        %v428 = vpack.c.b16 %v369, %v368
        %v429 = vpack.c.b16 %v371, %v370
        %v430 = vpack.c.b16 %v373, %v372
        %v431 = vpack.c.b16 %v375, %v374
        %v432 = vpack.c.b16 %v377, %v376
        %v433 = vpack.c.b16 %v379, %v378
        %v434 = vpack.c.b16 %v381, %v380
        %v435 = vpack.c.b16 %v383, %v382
        %v436 = vpack.c.b16 %v385, %v384
        %v437 = vpack.c.b16 %v387, %v386
        %v438 = vpack.c.b16 %v389, %v388
        %v439 = vpack.c.b16 %v391, %v390
        %v440 = vpack.c.b16 %v393, %v392
        %v441 = vpack.c.b16 %v395, %v394
        %v442 = vpack.c.b16 %v397, %v396
        %v443 = vpack.c.b16 %v399, %v398
        %v444 = vpack.c.b16 %v401, %v400
        %v445 = vpack.c.b16 %v403, %v402
        %v446 = vpack.c.b16 %v405, %v404
        %v447 = vpack.c.b16 %v407, %v406
        %v448 = vpack.c.b16 %v409, %v408
        %v449 = vpack.c.b16 %v411, %v410
        %v450 = vpack.c.b16 %v413, %v412
        %v451 = vpack.c.b16 %v415, %v414
        %v452 = vpack.c.b16 %v417, %v416
        %v453 = vpack.c.b16 %v419, %v418
        %v454 = vpack.c.b16 %v421, %v420
        %v455 = vpack.c.b16 %v423, %v422
        %488 = vmatprep.subr.bf16.mxu0 0
        %489 = vmatpush1.bf16.msra.mxu0 %v431
        %490 = vmatprep.subr.bf16.mxu0 0
        %491 = vmatpush1.bf16.msra.mxu0 %v430
        %492 = vmatprep.subr.bf16.mxu0 0
        %493 = vmatpush1.bf16.msra.mxu0 %v429
        %494 = vmatprep.subr.bf16.mxu0 0
        %495 = vmatpush1.bf16.msra.mxu0 %v428
        %496 = vmatprep.subr.bf16.mxu0 0
        %497 = vmatpush1.bf16.msra.mxu0 %v427
        %498 = vmatprep.subr.bf16.mxu0 0
        %499 = vmatpush1.bf16.msra.mxu0 %v426
        %500 = vmatprep.subr.bf16.mxu0 0
        %501 = vmatpush1.bf16.msra.mxu0 %v425
        %502 = vmatprep.subr.bf16.mxu0 0
        %503 = vmatpush1.bf16.msra.mxu0 %v424
        %504 = vmatprep.subr.bf16.mxu0 0
        %505 = vmatpush2.bf16.msra.mxu0 %v439
        %506 = vmatprep.subr.bf16.mxu0 0
        %507 = vmatpush2.bf16.msra.mxu0 %v438
        %508 = vmatprep.subr.bf16.mxu0 0
        %509 = vmatpush2.bf16.msra.mxu0 %v437
        %510 = vmatprep.subr.bf16.mxu0 0
        %511 = vmatpush2.bf16.msra.mxu0 %v436
        %512 = vmatprep.subr.bf16.mxu0 0
        %513 = vmatpush2.bf16.msra.mxu0 %v435
        %514 = vmatprep.subr.bf16.mxu0 0
        %515 = vmatpush2.bf16.msra.mxu0 %v434
        %516 = vmatprep.subr.bf16.mxu0 0
        %517 = vmatpush2.bf16.msra.mxu0 %v433
        %518 = vmatprep.subr.bf16.mxu0 0
        %519 = vmatpush2.bf16.msra.mxu0 %v432
        %520 = vmatprep.mubr.bf16.mxu0 %v289
        %521 = vmatmul.mubr.bf16.gmra.mxu0 %v288
        %v522 = vpop.f32.mrf.mxu0
        %v523 = vadd.f32 %v274, %v522
        %v524 = vpop.f32.mrf.mxu0
        %v525 = vpop.f32.mrf.mxu0
        %v526 = vadd.f32 %v274, %v525
        %v527 = vpop.f32.mrf.mxu0
        %528 = vdwg.mxu0
        %529 = vmatprep.subr.bf16.mxu0 0
        %530 = vmatpush1.bf16.msra.mxu0 %v447
        %531 = vmatprep.subr.bf16.mxu0 0
        %532 = vmatpush1.bf16.msra.mxu0 %v446
        %533 = vmatprep.subr.bf16.mxu0 0
        %534 = vmatpush1.bf16.msra.mxu0 %v445
        %535 = vmatprep.subr.bf16.mxu0 0
        %536 = vmatpush1.bf16.msra.mxu0 %v444
        %537 = vmatprep.subr.bf16.mxu0 0
        %538 = vmatpush1.bf16.msra.mxu0 %v443
        %539 = vmatprep.subr.bf16.mxu0 0
        %540 = vmatpush1.bf16.msra.mxu0 %v442
        %541 = vmatprep.subr.bf16.mxu0 0
        %542 = vmatpush1.bf16.msra.mxu0 %v441
        %543 = vmatprep.subr.bf16.mxu0 0
        %544 = vmatpush1.bf16.msra.mxu0 %v440
        %545 = vmatprep.subr.bf16.mxu0 0
        %546 = vmatpush2.bf16.msra.mxu0 %v455
        %547 = vmatprep.subr.bf16.mxu0 0
        %548 = vmatpush2.bf16.msra.mxu0 %v454
        %549 = vmatprep.subr.bf16.mxu0 0
        %550 = vmatpush2.bf16.msra.mxu0 %v453
        %551 = vmatprep.subr.bf16.mxu0 0
        %552 = vmatpush2.bf16.msra.mxu0 %v452
        %553 = vmatprep.subr.bf16.mxu0 0
        %554 = vmatpush2.bf16.msra.mxu0 %v451
        %555 = vmatprep.subr.bf16.mxu0 0
        %556 = vmatpush2.bf16.msra.mxu0 %v450
        %557 = vmatprep.subr.bf16.mxu0 0
        %558 = vmatpush2.bf16.msra.mxu0 %v449
        %559 = vmatprep.subr.bf16.mxu0 0
        %560 = vmatpush2.bf16.msra.mxu0 %v448
        %561 = vmatprep.mubr.bf16.mxu0 %v291
        %562 = vmatmul.mubr.bf16.gmra.mxu0 %v290
        %v563 = vpop.f32.mrf.mxu0
        %v564 = vadd.f32 %v523, %v563
        %v565 = vpop.f32.mrf.mxu0
        %v566 = vpop.f32.mrf.mxu0
        %v567 = vadd.f32 %v526, %v566
        %v568 = vpop.f32.mrf.mxu0
        %569 = vdwg.mxu0
        %v570 = vmax.f32 %v564, 0.0
        %v571 = vmax.f32 %v567, 0.0
        %v572 = vpack.c.bf16 %v571, %v570
        %v574 = vunpack.c.l.b16 %v572
        %v575 = vunpack.c.h.b16 %v572
        %v576 = vpack.c.b16 %v574, %v574
        %v577 = vpack.c.b16 %v575, %v575
        %580 = vst [vmem:[%s177] sm:$0xf] %v576
        %581 = vst [vmem:[%s177 + $0x4] sm:$0xf] %v577
        %s582 = sand.u32 %s90, 1
        %s583 = sand.u32 %s90, 1
        %s584 = smul.addr %s583, 8
        %s585 = scalar_lea.vmem [#allocation2], %s584
        // Predicated region
        $region33: #{forward.5} parent=31 // pred_check
          %p586 = pneg %p100
        $region34: #{forward.5} parent=31 // pred_check_branch
          %588 = sbr.rel (%p586) target = $region36
        $region35: #{forward.5} parent=31 // pred_region
          %s589 = smul.u32 2, %s14
          %s590 = ssub.s32 3, %s589
          %p591 = scmp.lt.s32.totalorder %s590, 2
          %s592 = scalar_select %p591, %s590, 2
          %s593 = smul.u32 64, %s592
          %p594 = scmp.ne.s32.totalorder 0, %s593
          %s595 = smul.addr %s589, 4
          %s596 = scalar_lea.vmem %s3, %s595
          // Predicated region
          $region37: #{forward.5} parent=35 // pred_check
            %p597 = pneg %p594
          $region38: #{forward.5} parent=35 // pred_check_branch
            %599 = sbr.rel (%p597) target = $region40
          $region39: #{forward.5} parent=35 // pred_region
            // Predicated region
            $region41: #{forward.5} parent=39 // pred_check
              _
            $region42: #{forward.5} parent=39 // pred_check_branch
              %601 = sbr.rel target = $region44
            $region43: #{forward.5} parent=39 // pred_region
              // Predicated region
              $region63: #{forward.5} parent=43 // pred_check
                _
              $region64: #{forward.5} parent=43 // pred_check_branch
                %653 = sbr.rel (0) target = $region66
              $region65: #{forward.5} parent=43 // pred_region
                %s655 = ssub.s32 16, 1
                %s656 = sshrl.u32 %s592, 1
                // While loop
                $region67: #{forward.5} parent=65 // loop_pre_header
                  _
                $region68: #{forward.5} parent=65 // loop_header
                  %s658 = sphi 0, %s660
                  %p659 = scmp.ge.s32.totalorder %s658, %s656
                  %s663 = sphi 0, %s672
                  %s664 = sphi %s585, %s675
                  %s665 = sphi %s596, %s676
                $region69: #{forward.5} parent=65 // loop_header_branch
                  %662 = sbr.rel (%p659) target = $region73
                $region70: #{forward.5} parent=65 // loop_body
                  %v666 = vld [vmem:[%s664] sm:%s655]
                  %667 = vst [vmem:[%s665] sm:%s655] %v666
                  %v668 = vld [vmem:[%s664 + $0x4] sm:%s655]
                  %669 = vst [vmem:[%s665 + $0x4] sm:%s655] %v668
                  %s670 = sadd.s32 1, %s663
                  %p671 = scmp.ge.s32.totalorder %s670, %s656
                  %s672 = scalar_select %p671, 0, %s670
                  %s673 = smul.u32 %s672, 8
                  %s674 = smul.u32 %s672, 8
                  %s675 = scalar_lea.vmem %s585, %s673 [#allocation2]
                  %s676 = scalar_lea.vmem %s596, %s674
                $region71: #{forward.5} parent=65 // loop_footer
                  %s660 = sadd.s32 %s658, 1
                $region72: #{forward.5} parent=65 // loop_footer_branch
                  %657 = sbr.rel target = $region68
                $region73: #{forward.5} parent=65 // loop_exit
                  _
                %s677 = sshrl.u32 %s592, 1
                %s678 = sand.u32 %s592, 1
                %s679 = smul.u32 %s677, 2
                %s680 = smul.u32 4, %s679
                %s681 = scalar_lea.vmem %s585, %s680 [#allocation2]
                %s682 = smul.u32 4, %s679
                %s683 = scalar_lea.vmem %s596, %s682
                // While loop
                $region74: #{forward.5} parent=65 // loop_pre_header
                  _
                $region75: #{forward.5} parent=65 // loop_header
                  %s685 = sphi 0, %s687
                  %p686 = scmp.ge.s32.totalorder %s685, %s678
                  %s690 = sphi 0, %s697
                  %s691 = sphi %s681, %s700
                  %s692 = sphi %s683, %s701
                $region76: #{forward.5} parent=65 // loop_header_branch
                  %689 = sbr.rel (%p686) target = $region80
                $region77: #{forward.5} parent=65 // loop_body
                  %v693 = vld [vmem:[%s691] sm:%s655]
                  %694 = vst [vmem:[%s692] sm:%s655] %v693
                  %s695 = sadd.s32 1, %s690
                  %p696 = scmp.ge.s32.totalorder %s695, %s678
                  %s697 = scalar_select %p696, 0, %s695
                  %s698 = smul.u32 %s697, 4
                  %s699 = smul.u32 %s697, 4
                  %s700 = scalar_lea.vmem %s681, %s698 [#allocation2]
                  %s701 = scalar_lea.vmem %s683, %s699
                $region78: #{forward.5} parent=65 // loop_footer
                  %s687 = sadd.s32 %s685, 1
                $region79: #{forward.5} parent=65 // loop_footer_branch
                  %684 = sbr.rel target = $region75
                $region80: #{forward.5} parent=65 // loop_exit
                  _
              $region66: #{forward.5} parent=43 // pred_fallthru
                _
            $region44: #{forward.5} parent=39 // pred_fallthru
              _
            // Predicated region
            $region45: #{forward.5} parent=39 // pred_check
              _
            $region46: #{forward.5} parent=39 // pred_check_branch
              %603 = sbr.rel (0) target = $region48
            $region47: #{forward.5} parent=39 // pred_region
              %s605 = ssub.s32 16, 1
              %s606 = sshrl.u32 %s592, 1
              // While loop
              $region49: #{forward.5} parent=47 // loop_pre_header
                _
              $region50: #{forward.5} parent=47 // loop_header
                %s608 = sphi 0, %s610
                %p609 = scmp.ge.s32.totalorder %s608, %s606
                %s613 = sphi 0, %s622
                %s614 = sphi %s585, %s625
                %s615 = sphi %s596, %s626
              $region51: #{forward.5} parent=47 // loop_header_branch
                %612 = sbr.rel (%p609) target = $region55
              $region52: #{forward.5} parent=47 // loop_body
                %v616 = vld [vmem:[%s614] sm:%s605]
                %617 = vst [vmem:[%s615] sm:%s605] %v616
                %v618 = vld [vmem:[%s614 + $0x4] sm:%s605]
                %619 = vst [vmem:[%s615 + $0x4] sm:%s605] %v618
                %s620 = sadd.s32 1, %s613
                %p621 = scmp.ge.s32.totalorder %s620, %s606
                %s622 = scalar_select %p621, 0, %s620
                %s623 = smul.u32 %s622, 8
                %s624 = smul.u32 %s622, 8
                %s625 = scalar_lea.vmem %s585, %s623 [#allocation2]
                %s626 = scalar_lea.vmem %s596, %s624
              $region53: #{forward.5} parent=47 // loop_footer
                %s610 = sadd.s32 %s608, 1
              $region54: #{forward.5} parent=47 // loop_footer_branch
                %607 = sbr.rel target = $region50
              $region55: #{forward.5} parent=47 // loop_exit
                _
              %s627 = sshrl.u32 %s592, 1
              %s628 = sand.u32 %s592, 1
              %s629 = smul.u32 %s627, 2
              %s630 = smul.u32 4, %s629
              %s631 = scalar_lea.vmem %s585, %s630 [#allocation2]
              %s632 = smul.u32 4, %s629
              %s633 = scalar_lea.vmem %s596, %s632
              // While loop
              $region56: #{forward.5} parent=47 // loop_pre_header
                _
              $region57: #{forward.5} parent=47 // loop_header
                %s635 = sphi 0, %s637
                %p636 = scmp.ge.s32.totalorder %s635, %s628
                %s640 = sphi 0, %s647
                %s641 = sphi %s631, %s650
                %s642 = sphi %s633, %s651
              $region58: #{forward.5} parent=47 // loop_header_branch
                %639 = sbr.rel (%p636) target = $region62
              $region59: #{forward.5} parent=47 // loop_body
                %v643 = vld [vmem:[%s641] sm:%s605]
                %644 = vst [vmem:[%s642] sm:%s605] %v643
                %s645 = sadd.s32 1, %s640
                %p646 = scmp.ge.s32.totalorder %s645, %s628
                %s647 = scalar_select %p646, 0, %s645
                %s648 = smul.u32 %s647, 4
                %s649 = smul.u32 %s647, 4
                %s650 = scalar_lea.vmem %s631, %s648 [#allocation2]
                %s651 = scalar_lea.vmem %s633, %s649
              $region60: #{forward.5} parent=47 // loop_footer
                %s637 = sadd.s32 %s635, 1
              $region61: #{forward.5} parent=47 // loop_footer_branch
                %634 = sbr.rel target = $region57
              $region62: #{forward.5} parent=47 // loop_exit
                _
            $region48: #{forward.5} parent=39 // pred_fallthru
              _
          $region40: #{forward.5} parent=35 // pred_fallthru
            _
          %702 = vnop
        $region36: #{forward.5} parent=31 // pred_fallthru
          _
      $region32: #{forward.5} parent=5 // pred_fallthru
        _
      %p703 = scmp.le.s32.totalorder 2, %s9
      // Predicated region
      $region81: #{forward.5} parent=5 // pred_check
        %p704 = pneg %p703
      $region82: #{forward.5} parent=5 // pred_check_branch
        %706 = sbr.rel (%p704) target = $region84
      $region83: #{forward.5} parent=5 // pred_region
        %s707 = ssub.s32 %s9, 2
        // Predicated region
        $region85: #{forward.5} parent=83 // pred_check
          %p708 = pneg %p106
        $region86: #{forward.5} parent=83 // pred_check_branch
          %710 = sbr.rel (%p708) target = $region88
        $region87: #{forward.5} parent=83 // pred_region
          %s711 = sand.u32 %s91, 1
          %s712 = sand.u32 %s91, 1
          %s713 = smul.addr %s712, 8
          %s714 = scalar_lea.vmem [#allocation2], %s713
        $region88: #{forward.5} parent=83 // pred_fallthru
          _
      $region84: #{forward.5} parent=5 // pred_fallthru
        _
    $region6: #{forward.5} parent=1 // loop_footer
      %s13 = sadd.s32 1, %s9
    $region7: #{forward.5} parent=1 // loop_footer_branch
      %8 = sbr.rel target = $region3
    $region8: #{forward.5} parent=1 // loop_exit
      _

// kernel: forward.4
$region0: #{forward.4}
  #allocation0 [shape = 'u32[]', space=smem, size = 0x4, offset = 0x4, fixed_abs, tag = 'smem constant byte address 0x4 - core index']
  #allocation1 [shape = 'u32[144,128]{1,0:T(1,128)}', space=vmem, size = 0x12000, scoped, tag = 'internal scratch']
  %s0 = inlined_call_operand.vmem [shape: bf16[160,256], index: 0, kind: input, shape index: {}]
  %s1 = inlined_call_operand.vmem [shape: bf16[256,128], index: 1, kind: input, shape index: {}]
  %s2 = inlined_call_operand.vmem [shape: f32[1,128], index: 2, kind: input, shape index: {}]
  %s3 = inlined_call_operand.vmem [shape: bf16[160,128], index: 3, kind: output, shape index: {}]
  %s4 = sld [smem:[#allocation0]]
  $region45: #{forward.4} parent=0
    _
  %s6 = ssub.s32 1, %s4
  %s7 = scalar_select 0, %s6, %s4
  loop: start=0, step=1, limit=4
  $region2: #{forward.4} parent=0 // loop_pre_header
    _
  $region3: #{forward.4} parent=0 // loop_header
    %s9 = sphi 0, %s13
    %p10 = scmp.ge.s32.totalorder %s9, 4
    %s19 = sphi 0, %s21
    %s22 = sphi 0, %s19
    %s23 = sphi 0, %s22
    %s39 = sphi 0, %s23
    %s43 = sphi 0, %s43
    %s45 = sphi 0, %s43
    %s46 = sphi 0, %s45
    %s60 = sphi 0, %s46
    %s64 = sphi 0, %s64
    %s66 = sphi 0, %s64
    %s67 = sphi 0, %s66
    %s81 = sphi 0, %s67
    %s87 = sphi 0, %s89
    %s90 = sphi 0, %s87
    %s91 = sphi 0, %s90
    %s107 = sphi 0, %s91
  $region4: #{forward.4} parent=0 // loop_header_branch
    %12 = sbr.rel (%p10) target = $region8
  $region5: #{forward.4} parent=0 // loop_body
    %s14 = ssub.s32 %s9, 1
    %s15 = ssub.s32 %s9, 2
    %s16 = sadd.s32 %s9, 1
    %s17 = ssub.s32 %s9, %s16
    %p18 = scmp.eq.s32.totalorder %s17, 0
    %s20 = sadd.s32 %s19, 1
    %s21 = scalar_select %p18, %s19, %s20
    %p24 = pneg %p18
    %p25 = scmp.eq.s32.totalorder %s9, 1
    %p26 = por %p24, %p25
    %p27 = scmp.ne.s32.totalorder %s19, %s22
    %p28 = scmp.eq.s32.totalorder %s9, 0
    %p29 = por %p27, %p28
    %p30 = scmp.ne.s32.totalorder %s19, %s22
    %p31 = scmp.eq.s32.totalorder %s14, 1
    %p32 = por %p30, %p31
    %p33 = scmp.ne.s32.totalorder %s22, %s23
    %p34 = scmp.eq.s32.totalorder %s14, 0
    %p35 = por %p33, %p34
    %p36 = scmp.ne.s32.totalorder %s22, %s23
    %p37 = scmp.eq.s32.totalorder %s15, 1
    %p38 = por %p36, %p37
    %p40 = scmp.ne.s32.totalorder %s23, %s39
    %p41 = scmp.eq.s32.totalorder %s15, 0
    %p42 = por %p40, %p41
    %s44 = sadd.s32 %s43, 1
    %p47 = scmp.eq.s32.totalorder %s9, 1
    %p48 = scmp.ne.s32.totalorder %s43, %s45
    %p49 = scmp.eq.s32.totalorder %s9, 0
    %p50 = por %p48, %p49
    %p51 = scmp.ne.s32.totalorder %s43, %s45
    %p52 = scmp.eq.s32.totalorder %s14, 1
    %p53 = por %p51, %p52
    %p54 = scmp.ne.s32.totalorder %s45, %s46
    %p55 = scmp.eq.s32.totalorder %s14, 0
    %p56 = por %p54, %p55
    %p57 = scmp.ne.s32.totalorder %s45, %s46
    %p58 = scmp.eq.s32.totalorder %s15, 1
    %p59 = por %p57, %p58
    %p61 = scmp.ne.s32.totalorder %s46, %s60
    %p62 = scmp.eq.s32.totalorder %s15, 0
    %p63 = por %p61, %p62
    %s65 = sadd.s32 %s64, 1
    %p68 = scmp.eq.s32.totalorder %s9, 1
    %p69 = scmp.ne.s32.totalorder %s64, %s66
    %p70 = scmp.eq.s32.totalorder %s9, 0
    %p71 = por %p69, %p70
    %p72 = scmp.ne.s32.totalorder %s64, %s66
    %p73 = scmp.eq.s32.totalorder %s14, 1
    %p74 = por %p72, %p73
    %p75 = scmp.ne.s32.totalorder %s66, %s67
    %p76 = scmp.eq.s32.totalorder %s14, 0
    %p77 = por %p75, %p76
    %p78 = scmp.ne.s32.totalorder %s66, %s67
    %p79 = scmp.eq.s32.totalorder %s15, 1
    %p80 = por %p78, %p79
    %p82 = scmp.ne.s32.totalorder %s67, %s81
    %p83 = scmp.eq.s32.totalorder %s15, 0
    %p84 = por %p82, %p83
    %s85 = ssub.s32 %s9, %s16
    %p86 = scmp.eq.s32.totalorder %s85, 0
    %s88 = sadd.s32 %s87, 1
    %s89 = scalar_select %p86, %s87, %s88
    %p92 = pneg %p86
    %p93 = scmp.eq.s32.totalorder %s9, 1
    %p94 = por %p92, %p93
    %p95 = scmp.ne.s32.totalorder %s87, %s90
    %p96 = scmp.eq.s32.totalorder %s9, 0
    %p97 = por %p95, %p96
    %p98 = scmp.ne.s32.totalorder %s87, %s90
    %p99 = scmp.eq.s32.totalorder %s14, 1
    %p100 = por %p98, %p99
    %p101 = scmp.ne.s32.totalorder %s90, %s91
    %p102 = scmp.eq.s32.totalorder %s14, 0
    %p103 = por %p101, %p102
    %p104 = scmp.ne.s32.totalorder %s90, %s91
    %p105 = scmp.eq.s32.totalorder %s15, 1
    %p106 = por %p104, %p105
    %p108 = scmp.ne.s32.totalorder %s91, %s107
    %p109 = scmp.eq.s32.totalorder %s15, 0
    %p110 = por %p108, %p109
    %p111 = scmp.le.s32.totalorder 1, %s9
    %p112 = scmp.lt.s32.totalorder %s9, 3
    %p113 = pnand %p111, %p112
    %p114 = pneg %p113
    // Predicated region
    $region9: #{forward.4} parent=5 // pred_check
      _
    $region10: #{forward.4} parent=5 // pred_check_branch
      %116 = sbr.rel (%p113) target = $region12
    $region11: #{forward.4} parent=5 // pred_region
      %s117 = ssub.s32 %s9, 1
      // Predicated region
      $region13: #{forward.4} parent=11 // pred_check
        %p118 = pneg %p56
      $region14: #{forward.4} parent=11 // pred_check_branch
        %120 = sbr.rel (%p118) target = $region16
      $region15: #{forward.4} parent=11 // pred_region
        _
      $region16: #{forward.4} parent=11 // pred_fallthru
        _
      // Predicated region
      $region17: #{forward.4} parent=11 // pred_check
        %p121 = pneg %p77
      $region18: #{forward.4} parent=11 // pred_check_branch
        %123 = sbr.rel (%p121) target = $region20
      $region19: #{forward.4} parent=11 // pred_region
        _
      $region20: #{forward.4} parent=11 // pred_fallthru
        _
    $region12: #{forward.4} parent=5 // pred_fallthru
      _
    %p124 = scmp.lt.s32.totalorder %s9, 2
    // Predicated region
    $region21: #{forward.4} parent=5 // pred_check
      %p125 = pneg %p124
    $region22: #{forward.4} parent=5 // pred_check_branch
      %127 = sbr.rel (%p125) target = $region24
    $region23: #{forward.4} parent=5 // pred_region
      // Predicated region
      $region25: #{forward.4} parent=23 // pred_check
        %p128 = pneg %p29
      $region26: #{forward.4} parent=23 // pred_check_branch
        %130 = sbr.rel (%p128) target = $region28
      $region27: #{forward.4} parent=23 // pred_region
        %s131 = smul.u32 10, %s9
        %p132 = scmp.lt.s32.totalorder %s131, 19
        %s133 = scalar_select %p132, %s131, 19
        %s134 = smul.addr %s133, 2
        %s135 = smul.addr %s134, 4
        %s136 = scalar_lea.vmem %s0, %s135
        %s137 = smul.u32 10, %s9
      $region28: #{forward.4} parent=23 // pred_fallthru
        _
    $region24: #{forward.4} parent=5 // pred_fallthru
      _
    %p138 = scmp.le.s32.totalorder 1, %s9
    %p139 = scmp.lt.s32.totalorder %s9, 3
    %p140 = pnand %p138, %p139
    %p141 = pneg %p140
    // Predicated region
    $region29: #{forward.4} parent=5 // pred_check
      _
    $region30: #{forward.4} parent=5 // pred_check_branch
      %143 = sbr.rel (%p140) target = $region32
    $region31: #{forward.4} parent=5 // pred_region
      %s144 = ssub.s32 %s9, 1
      %s145 = smul.u32 10, %s14
      %p146 = scmp.lt.s32.totalorder %s145, 19
      %s147 = scalar_select %p146, %s145, 19
      %s148 = smul.addr %s147, 2
      %s149 = smul.addr %s148, 4
      %s150 = scalar_lea.vmem %s0, %s149
      %p151 = pneg %p35
      %p152 = pneg %p32
      %p153 = pneg %p56
      %p154 = pneg %p53
      %p155 = pneg %p77
      %p156 = pneg %p74
      %p157 = pneg %p103
      %p158 = pneg %p100
      %s159 = smul.u32 10, %s14
      %p160 = scmp.lt.s32.totalorder %s159, 19
      %s161 = scalar_select %p160, %s159, 19
      %s162 = smul.addr %s161, 4
      %s163 = scalar_lea.vmem %s3, %s162
      %s164 = smul.u32 10, %s14
      %p165 = scmp.lt.s32.totalorder %s164, 19
      %s166 = scalar_select %p165, %s164, 19
      %s167 = smul.addr %s166, 2
      %s168 = smul.addr %s167, 4
      %s169 = scalar_lea.vmem %s0, %s168
      %s170 = smul.u32 10, %s14
      %s171 = smul.u32 10, %s14
      %p172 = scmp.lt.s32.totalorder %s171, 19
      %s173 = scalar_select %p172, %s171, 19
      %s174 = smul.addr %s173, 4
      %s175 = scalar_lea.vmem %s3, %s174
      %s176 = smul.u32 10, %s14
      %v178 = vld [vmem:[%s169] sm:$0xff]
      %v179 = vld [vmem:[%s169 + $0x8] sm:$0xff]
      %v180 = vld [vmem:[%s169 + $0x10] sm:$0xff]
      %v181 = vld [vmem:[%s169 + $0x18] sm:$0xff]
      %v182 = vld [vmem:[%s169 + $0x20] sm:$0xff]
      %v183 = vld [vmem:[%s169 + $0x28] sm:$0xff]
      %v184 = vld [vmem:[%s169 + $0x30] sm:$0xff]
      %v185 = vld [vmem:[%s169 + $0x38] sm:$0xff]
      %v186 = vld [vmem:[%s169 + $0x40] sm:$0xff]
      %v187 = vld [vmem:[%s169 + $0x48] sm:$0xff]
      %v188 = vld [vmem:[%s1] sm:$0xf]
      %v189 = vld [vmem:[%s1 + $0x4] sm:$0xf]
      %v190 = vld [vmem:[%s1 + $0x8] sm:$0xf]
      %v191 = vld [vmem:[%s1 + $0xc] sm:$0xf]
      %v192 = vld [vmem:[%s1 + $0x10] sm:$0xf]
      %v193 = vld [vmem:[%s1 + $0x14] sm:$0xf]
      %v194 = vld [vmem:[%s1 + $0x18] sm:$0xf]
      %v195 = vld [vmem:[%s1 + $0x1c] sm:$0xf]
      %v196 = vld [vmem:[%s1 + $0x20] sm:$0xf]
      %v197 = vld [vmem:[%s1 + $0x24] sm:$0xf]
      %v198 = vld [vmem:[%s1 + $0x28] sm:$0xf]
      %v199 = vld [vmem:[%s1 + $0x2c] sm:$0xf]
      %v200 = vld [vmem:[%s1 + $0x30] sm:$0xf]
      %v201 = vld [vmem:[%s1 + $0x34] sm:$0xf]
      %v202 = vld [vmem:[%s1 + $0x38] sm:$0xf]
      %v203 = vld [vmem:[%s1 + $0x3c] sm:$0xf]
      %v204 = vld [vmem:[%s1 + $0x40] sm:$0xf]
      %v205 = vld [vmem:[%s1 + $0x44] sm:$0xf]
      %v206 = vld [vmem:[%s1 + $0x48] sm:$0xf]
      %v207 = vld [vmem:[%s1 + $0x4c] sm:$0xf]
      %v208 = vld [vmem:[%s1 + $0x50] sm:$0xf]
      %v209 = vld [vmem:[%s1 + $0x54] sm:$0xf]
      %v210 = vld [vmem:[%s1 + $0x58] sm:$0xf]
      %v211 = vld [vmem:[%s1 + $0x5c] sm:$0xf]
      %v212 = vld [vmem:[%s1 + $0x60] sm:$0xf]
      %v213 = vld [vmem:[%s1 + $0x64] sm:$0xf]
      %v214 = vld [vmem:[%s1 + $0x68] sm:$0xf]
      %v215 = vld [vmem:[%s1 + $0x6c] sm:$0xf]
      %v216 = vld [vmem:[%s1 + $0x70] sm:$0xf]
      %v217 = vld [vmem:[%s1 + $0x74] sm:$0xf]
      %v218 = vld [vmem:[%s1 + $0x78] sm:$0xf]
      %v219 = vld [vmem:[%s1 + $0x7c] sm:$0xf]
      %v220 = vld [vmem:[%s2] sm:$0x1]
      %v222 = vlaneseq
      %v223 = vshrl.u32 %v222, 7
      %v224 = vsub.s32 0, %v223
      %v225 = vrot.slane %v220, %v224
      %v237 = vunpack.c.l.b16 %v178
      %v238 = vunpack.c.h.b16 %v178
      %v239 = vunpack.c.l.b16 %v179
      %v240 = vunpack.c.h.b16 %v179
      %v241 = vunpack.c.l.b16 %v180
      %v242 = vunpack.c.h.b16 %v180
      %v243 = vunpack.c.l.b16 %v181
      %v244 = vunpack.c.h.b16 %v181
      %v245 = vunpack.c.l.b16 %v182
      %v246 = vunpack.c.h.b16 %v182
      %v247 = vunpack.c.l.b16 %v183
      %v248 = vunpack.c.h.b16 %v183
      %v249 = vunpack.c.l.b16 %v184
      %v250 = vunpack.c.h.b16 %v184
      %v251 = vunpack.c.l.b16 %v185
      %v252 = vunpack.c.h.b16 %v185
      %v253 = vunpack.c.l.b16 %v186
      %v254 = vunpack.c.h.b16 %v186
      %v255 = vunpack.c.l.b16 %v187
      %v256 = vunpack.c.h.b16 %v187
      %v257 = vpack.c.b16 %v239, %v237
      %v258 = vpack.c.b16 %v240, %v238
      %v259 = vpack.c.b16 %v243, %v241
      %v260 = vpack.c.b16 %v244, %v242
      %v261 = vpack.c.b16 %v247, %v245
      %v262 = vpack.c.b16 %v248, %v246
      %v263 = vpack.c.b16 %v251, %v249
      %v264 = vpack.c.b16 %v252, %v250
      %v265 = vpack.c.b16 %v255, %v253
      %v266 = vpack.c.b16 %v256, %v254
      %v309 = vunpack.c.l.b16 %v188
      %v310 = vunpack.c.l.b16 %v189
      %v311 = vunpack.c.l.b16 %v190
      %v312 = vunpack.c.l.b16 %v191
      %v313 = vunpack.c.l.b16 %v192
      %v314 = vunpack.c.l.b16 %v193
      %v315 = vunpack.c.l.b16 %v194
      %v316 = vunpack.c.l.b16 %v195
      %v317 = vunpack.c.l.b16 %v196
      %v318 = vunpack.c.l.b16 %v197
      %v319 = vunpack.c.l.b16 %v198
      %v320 = vunpack.c.l.b16 %v199
      %v321 = vunpack.c.l.b16 %v200
      %v322 = vunpack.c.l.b16 %v201
      %v323 = vunpack.c.l.b16 %v202
      %v324 = vunpack.c.l.b16 %v203
      %v325 = vunpack.c.l.b16 %v204
      %v326 = vunpack.c.l.b16 %v205
      %v327 = vunpack.c.l.b16 %v206
      %v328 = vunpack.c.l.b16 %v207
      %v329 = vunpack.c.l.b16 %v208
      %v330 = vunpack.c.l.b16 %v209
      %v331 = vunpack.c.l.b16 %v210
      %v332 = vunpack.c.l.b16 %v211
      %v333 = vunpack.c.l.b16 %v212
      %v334 = vunpack.c.l.b16 %v213
      %v335 = vunpack.c.l.b16 %v214
      %v336 = vunpack.c.l.b16 %v215
      %v337 = vunpack.c.l.b16 %v216
      %v338 = vunpack.c.l.b16 %v217
      %v339 = vunpack.c.l.b16 %v218
      %v340 = vunpack.c.l.b16 %v219
      %v341 = vpack.c.b16 %v310, %v309
      %v342 = vpack.c.b16 %v312, %v311
      %v343 = vpack.c.b16 %v314, %v313
      %v344 = vpack.c.b16 %v316, %v315
      %v345 = vpack.c.b16 %v318, %v317
      %v346 = vpack.c.b16 %v320, %v319
      %v347 = vpack.c.b16 %v322, %v321
      %v348 = vpack.c.b16 %v324, %v323
      %v349 = vpack.c.b16 %v326, %v325
      %v350 = vpack.c.b16 %v328, %v327
      %v351 = vpack.c.b16 %v330, %v329
      %v352 = vpack.c.b16 %v332, %v331
      %v353 = vpack.c.b16 %v334, %v333
      %v354 = vpack.c.b16 %v336, %v335
      %v355 = vpack.c.b16 %v338, %v337
      %v356 = vpack.c.b16 %v340, %v339
      %373 = vmatprep.subr.bf16.mxu0 0
      %374 = vmatpush1.bf16.msra.mxu0 %v348
      %375 = vmatprep.subr.bf16.mxu0 0
      %376 = vmatpush1.bf16.msra.mxu0 %v347
      %377 = vmatprep.subr.bf16.mxu0 0
      %378 = vmatpush1.bf16.msra.mxu0 %v346
      %379 = vmatprep.subr.bf16.mxu0 0
      %380 = vmatpush1.bf16.msra.mxu0 %v345
      %381 = vmatprep.subr.bf16.mxu0 0
      %382 = vmatpush1.bf16.msra.mxu0 %v344
      %383 = vmatprep.subr.bf16.mxu0 0
      %384 = vmatpush1.bf16.msra.mxu0 %v343
      %385 = vmatprep.subr.bf16.mxu0 0
      %386 = vmatpush1.bf16.msra.mxu0 %v342
      %387 = vmatprep.subr.bf16.mxu0 0
      %388 = vmatpush1.bf16.msra.mxu0 %v341
      %389 = vmatprep.subr.bf16.mxu0 0
      %390 = vmatpush2.bf16.msra.mxu0 %v356
      %391 = vmatprep.subr.bf16.mxu0 0
      %392 = vmatpush2.bf16.msra.mxu0 %v355
      %393 = vmatprep.subr.bf16.mxu0 0
      %394 = vmatpush2.bf16.msra.mxu0 %v354
      %395 = vmatprep.subr.bf16.mxu0 0
      %396 = vmatpush2.bf16.msra.mxu0 %v353
      %397 = vmatprep.subr.bf16.mxu0 0
      %398 = vmatpush2.bf16.msra.mxu0 %v352
      %399 = vmatprep.subr.bf16.mxu0 0
      %400 = vmatpush2.bf16.msra.mxu0 %v351
      %401 = vmatprep.subr.bf16.mxu0 0
      %402 = vmatpush2.bf16.msra.mxu0 %v350
      %403 = vmatprep.subr.bf16.mxu0 0
      %404 = vmatpush2.bf16.msra.mxu0 %v349
      %405 = vmatprep.mubr.bf16.mxu0 %v258
      %406 = vmatmul.mubr.bf16.gmra.mxu0 %v257
      %v407 = vpop.f32.mrf.mxu0
      %v408 = vadd.f32 %v225, %v407
      %v409 = vpop.f32.mrf.mxu0
      %v410 = vpop.f32.mrf.mxu0
      %v411 = vadd.f32 %v225, %v410
      %v412 = vpop.f32.mrf.mxu0
      %413 = vmatprep.mubr.bf16.mxu0 %v260
      %414 = vmatmul.mubr.bf16.gmra.mxu0 %v259
      %v415 = vpop.f32.mrf.mxu0
      %v416 = vadd.f32 %v225, %v415
      %v417 = vpop.f32.mrf.mxu0
      %v418 = vpop.f32.mrf.mxu0
      %v419 = vadd.f32 %v225, %v418
      %v420 = vpop.f32.mrf.mxu0
      %421 = vmatprep.mubr.bf16.mxu0 %v262
      %422 = vmatmul.mubr.bf16.gmra.mxu0 %v261
      %v423 = vpop.f32.mrf.mxu0
      %v424 = vadd.f32 %v225, %v423
      %v425 = vpop.f32.mrf.mxu0
      %v426 = vpop.f32.mrf.mxu0
      %v427 = vadd.f32 %v225, %v426
      %v428 = vpop.f32.mrf.mxu0
      %429 = vmatprep.mubr.bf16.mxu0 %v264
      %430 = vmatmul.mubr.bf16.gmra.mxu0 %v263
      %v431 = vpop.f32.mrf.mxu0
      %v432 = vadd.f32 %v225, %v431
      %v433 = vpop.f32.mrf.mxu0
      %v434 = vpop.f32.mrf.mxu0
      %v435 = vadd.f32 %v225, %v434
      %v436 = vpop.f32.mrf.mxu0
      %437 = vmatprep.mubr.bf16.mxu0 %v266
      %438 = vmatmul.mubr.bf16.gmra.mxu0 %v265
      %v439 = vpop.f32.mrf.mxu0
      %v440 = vadd.f32 %v225, %v439
      %v441 = vpop.f32.mrf.mxu0
      %v442 = vpop.f32.mrf.mxu0
      %v443 = vadd.f32 %v225, %v442
      %v444 = vpop.f32.mrf.mxu0
      %445 = vdwg.mxu0
      %v446 = vmax.f32 %v408, 0.0
      %v447 = vmax.f32 %v411, 0.0
      %v448 = vmax.f32 %v416, 0.0
      %v449 = vmax.f32 %v419, 0.0
      %v450 = vmax.f32 %v424, 0.0
      %v451 = vmax.f32 %v427, 0.0
      %v452 = vmax.f32 %v432, 0.0
      %v453 = vmax.f32 %v435, 0.0
      %v454 = vmax.f32 %v440, 0.0
      %v455 = vmax.f32 %v443, 0.0
      %v456 = vpack.c.bf16 %v447, %v446
      %v457 = vpack.c.bf16 %v449, %v448
      %v458 = vpack.c.bf16 %v451, %v450
      %v459 = vpack.c.bf16 %v453, %v452
      %v460 = vpack.c.bf16 %v455, %v454
      %v466 = vunpack.c.l.b16 %v456
      %v467 = vunpack.c.h.b16 %v456
      %v468 = vunpack.c.l.b16 %v457
      %v469 = vunpack.c.h.b16 %v457
      %v470 = vunpack.c.l.b16 %v458
      %v471 = vunpack.c.h.b16 %v458
      %v472 = vunpack.c.l.b16 %v459
      %v473 = vunpack.c.h.b16 %v459
      %v474 = vunpack.c.l.b16 %v460
      %v475 = vunpack.c.h.b16 %v460
      %v476 = vpack.c.b16 %v466, %v466
      %v477 = vpack.c.b16 %v467, %v467
      %v478 = vpack.c.b16 %v468, %v468
      %v479 = vpack.c.b16 %v469, %v469
      %v480 = vpack.c.b16 %v470, %v470
      %v481 = vpack.c.b16 %v471, %v471
      %v482 = vpack.c.b16 %v472, %v472
      %v483 = vpack.c.b16 %v473, %v473
      %v484 = vpack.c.b16 %v474, %v474
      %v485 = vpack.c.b16 %v475, %v475
      %496 = vst [vmem:[%s175] sm:$0xf] %v476
      %497 = vst [vmem:[%s175 + $0x4] sm:$0xf] %v477
      %498 = vst [vmem:[%s175 + $0x8] sm:$0xf] %v478
      %499 = vst [vmem:[%s175 + $0xc] sm:$0xf] %v479
      %500 = vst [vmem:[%s175 + $0x10] sm:$0xf] %v480
      %501 = vst [vmem:[%s175 + $0x14] sm:$0xf] %v481
      %502 = vst [vmem:[%s175 + $0x18] sm:$0xf] %v482
      %503 = vst [vmem:[%s175 + $0x1c] sm:$0xf] %v483
      %504 = vst [vmem:[%s175 + $0x20] sm:$0xf] %v484
      %505 = vst [vmem:[%s175 + $0x24] sm:$0xf] %v485
      %s506 = smul.u32 10, %s14
      %p507 = scmp.lt.s32.totalorder %s506, 19
      %s508 = scalar_select %p507, %s506, 19
      %s509 = smul.addr %s508, 4
      %s510 = scalar_lea.vmem %s3, %s509
      // Predicated region
      $region33: #{forward.4} parent=31 // pred_check
        %p511 = pneg %p100
      $region34: #{forward.4} parent=31 // pred_check_branch
        %513 = sbr.rel (%p511) target = $region36
      $region35: #{forward.4} parent=31 // pred_region
        %s514 = smul.u32 10, %s14
      $region36: #{forward.4} parent=31 // pred_fallthru
        _
    $region32: #{forward.4} parent=5 // pred_fallthru
      _
    %p515 = scmp.le.s32.totalorder 2, %s9
    // Predicated region
    $region37: #{forward.4} parent=5 // pred_check
      %p516 = pneg %p515
    $region38: #{forward.4} parent=5 // pred_check_branch
      %518 = sbr.rel (%p516) target = $region40
    $region39: #{forward.4} parent=5 // pred_region
      %s519 = ssub.s32 %s9, 2
      // Predicated region
      $region41: #{forward.4} parent=39 // pred_check
        %p520 = pneg %p106
      $region42: #{forward.4} parent=39 // pred_check_branch
        %522 = sbr.rel (%p520) target = $region44
      $region43: #{forward.4} parent=39 // pred_region
        %s523 = smul.u32 10, %s15
        %p524 = scmp.lt.s32.totalorder %s523, 19
        %s525 = scalar_select %p524, %s523, 19
        %s526 = smul.addr %s525, 4
        %s527 = scalar_lea.vmem %s3, %s526
      $region44: #{forward.4} parent=39 // pred_fallthru
        _
    $region40: #{forward.4} parent=5 // pred_fallthru
      _
  $region6: #{forward.4} parent=0 // loop_footer
    %s13 = sadd.s32 1, %s9
  $region7: #{forward.4} parent=0 // loop_footer_branch
    %8 = sbr.rel target = $region3
  $region8: #{forward.4} parent=0 // loop_exit
    _

// kernel: forward.6
$region0: #{forward.6}
  #allocation0 [shape = 'u32[]', space=smem, size = 0x4, offset = 0x4, fixed_abs, tag = 'smem constant byte address 0x4 - core index']
  #allocation1 [shape = 'u32[144,128]{1,0:T(1,128)}', space=vmem, size = 0x12000, scoped, tag = 'internal scratch']
  %s0 = inlined_call_operand.vmem [shape: bf16[4,576], index: 0, kind: input, shape index: {}]
  %s1 = inlined_call_operand.vmem [shape: bf16[576,128], index: 1, kind: input, shape index: {}]
  %s2 = inlined_call_operand.vmem [shape: f32[1,128], index: 2, kind: input, shape index: {}]
  %s3 = inlined_call_operand.vmem [shape: bf16[4,128], index: 3, kind: output, shape index: {}]
  %s4 = sld [smem:[#allocation0]]
  $region52: #{forward.6} parent=0
    _
  %s6 = ssub.s32 1, %s4
  %s7 = scalar_select 0, %s6, %s4
  $region1: #{forward.6} parent=0
    #allocation2 [shape = 'u8[4096]{0}', space=vmem, size = 0x1000, scoped, tag = 'output window, operand 0, single buffered']
    // Predicated region
    $region2: #{forward.6} parent=1 // pred_check
      _
    $region3: #{forward.6} parent=1 // pred_check_branch
      %9 = sbr.rel (0) target = $region5
    $region4: #{forward.6} parent=1 // pred_region
      _
    $region5: #{forward.6} parent=1 // pred_fallthru
      _
    // Predicated region
    $region6: #{forward.6} parent=1 // pred_check
      _
    $region7: #{forward.6} parent=1 // pred_check_branch
      %11 = sbr.rel (0) target = $region9
    $region8: #{forward.6} parent=1 // pred_region
      _
    $region9: #{forward.6} parent=1 // pred_fallthru
      _
    // Predicated region
    $region10: #{forward.6} parent=1 // pred_check
      _
    $region11: #{forward.6} parent=1 // pred_check_branch
      %13 = sbr.rel (0) target = $region13
    $region12: #{forward.6} parent=1 // pred_region
      _
    $region13: #{forward.6} parent=1 // pred_fallthru
      _
    %v15 = vld [vmem:[%s0] sm:$0xff]
    %v16 = vld [vmem:[%s0 + $0x8] sm:$0x3]
    %v17 = vld [vmem:[%s0 + $0xa] sm:$0xff]
    %v18 = vld [vmem:[%s0 + $0x12] sm:$0x3]
    %v19 = vld [vmem:[%s0 + $0x14] sm:$0xff]
    %v20 = vld [vmem:[%s0 + $0x1c] sm:$0x3]
    %v21 = vld [vmem:[%s0 + $0x1e] sm:$0xff]
    %v22 = vld [vmem:[%s0 + $0x26] sm:$0x3]
    %v23 = vld [vmem:[%s1] sm:$0xf]
    %v24 = vld [vmem:[%s1 + $0x4] sm:$0xf]
    %v25 = vld [vmem:[%s1 + $0x8] sm:$0xf]
    %v26 = vld [vmem:[%s1 + $0xc] sm:$0xf]
    %v27 = vld [vmem:[%s1 + $0x10] sm:$0xf]
    %v28 = vld [vmem:[%s1 + $0x14] sm:$0xf]
    %v29 = vld [vmem:[%s1 + $0x18] sm:$0xf]
    %v30 = vld [vmem:[%s1 + $0x1c] sm:$0xf]
    %v31 = vld [vmem:[%s1 + $0x20] sm:$0xf]
    %v32 = vld [vmem:[%s1 + $0x24] sm:$0xf]
    %v33 = vld [vmem:[%s1 + $0x28] sm:$0xf]
    %v34 = vld [vmem:[%s1 + $0x2c] sm:$0xf]
    %v35 = vld [vmem:[%s1 + $0x30] sm:$0xf]
    %v36 = vld [vmem:[%s1 + $0x34] sm:$0xf]
    %v37 = vld [vmem:[%s1 + $0x38] sm:$0xf]
    %v38 = vld [vmem:[%s1 + $0x3c] sm:$0xf]
    %v39 = vld [vmem:[%s1 + $0x40] sm:$0xf]
    %v40 = vld [vmem:[%s1 + $0x44] sm:$0xf]
    %v41 = vld [vmem:[%s1 + $0x48] sm:$0xf]
    %v42 = vld [vmem:[%s1 + $0x4c] sm:$0xf]
    %v43 = vld [vmem:[%s1 + $0x50] sm:$0xf]
    %v44 = vld [vmem:[%s1 + $0x54] sm:$0xf]
    %v45 = vld [vmem:[%s1 + $0x58] sm:$0xf]
    %v46 = vld [vmem:[%s1 + $0x5c] sm:$0xf]
    %v47 = vld [vmem:[%s1 + $0x60] sm:$0xf]
    %v48 = vld [vmem:[%s1 + $0x64] sm:$0xf]
    %v49 = vld [vmem:[%s1 + $0x68] sm:$0xf]
    %v50 = vld [vmem:[%s1 + $0x6c] sm:$0xf]
    %v51 = vld [vmem:[%s1 + $0x70] sm:$0xf]
    %v52 = vld [vmem:[%s1 + $0x74] sm:$0xf]
    %v53 = vld [vmem:[%s1 + $0x78] sm:$0xf]
    %v54 = vld [vmem:[%s1 + $0x7c] sm:$0xf]
    %v55 = vld [vmem:[%s1 + $0x80] sm:$0xf]
    %v56 = vld [vmem:[%s1 + $0x84] sm:$0xf]
    %v57 = vld [vmem:[%s1 + $0x88] sm:$0xf]
    %v58 = vld [vmem:[%s1 + $0x8c] sm:$0xf]
    %v59 = vld [vmem:[%s1 + $0x90] sm:$0xf]
    %v60 = vld [vmem:[%s1 + $0x94] sm:$0xf]
    %v61 = vld [vmem:[%s1 + $0x98] sm:$0xf]
    %v62 = vld [vmem:[%s1 + $0x9c] sm:$0xf]
    %v63 = vld [vmem:[%s1 + $0xa0] sm:$0xf]
    %v64 = vld [vmem:[%s1 + $0xa4] sm:$0xf]
    %v65 = vld [vmem:[%s1 + $0xa8] sm:$0xf]
    %v66 = vld [vmem:[%s1 + $0xac] sm:$0xf]
    %v67 = vld [vmem:[%s1 + $0xb0] sm:$0xf]
    %v68 = vld [vmem:[%s1 + $0xb4] sm:$0xf]
    %v69 = vld [vmem:[%s1 + $0xb8] sm:$0xf]
    %v70 = vld [vmem:[%s1 + $0xbc] sm:$0xf]
    %v71 = vld [vmem:[%s1 + $0xc0] sm:$0xf]
    %v72 = vld [vmem:[%s1 + $0xc4] sm:$0xf]
    %v73 = vld [vmem:[%s1 + $0xc8] sm:$0xf]
    %v74 = vld [vmem:[%s1 + $0xcc] sm:$0xf]
    %v75 = vld [vmem:[%s1 + $0xd0] sm:$0xf]
    %v76 = vld [vmem:[%s1 + $0xd4] sm:$0xf]
    %v77 = vld [vmem:[%s1 + $0xd8] sm:$0xf]
    %v78 = vld [vmem:[%s1 + $0xdc] sm:$0xf]
    %v79 = vld [vmem:[%s1 + $0xe0] sm:$0xf]
    %v80 = vld [vmem:[%s1 + $0xe4] sm:$0xf]
    %v81 = vld [vmem:[%s1 + $0xe8] sm:$0xf]
    %v82 = vld [vmem:[%s1 + $0xec] sm:$0xf]
    %v83 = vld [vmem:[%s1 + $0xf0] sm:$0xf]
    %v84 = vld [vmem:[%s1 + $0xf4] sm:$0xf]
    %v85 = vld [vmem:[%s1 + $0xf8] sm:$0xf]
    %v86 = vld [vmem:[%s1 + $0xfc] sm:$0xf]
    %v87 = vld [vmem:[%s1 + $0x100] sm:$0xf]
    %v88 = vld [vmem:[%s1 + $0x104] sm:$0xf]
    %v89 = vld [vmem:[%s1 + $0x108] sm:$0xf]
    %v90 = vld [vmem:[%s1 + $0x10c] sm:$0xf]
    %v91 = vld [vmem:[%s1 + $0x110] sm:$0xf]
    %v92 = vld [vmem:[%s1 + $0x114] sm:$0xf]
    %v93 = vld [vmem:[%s1 + $0x118] sm:$0xf]
    %v94 = vld [vmem:[%s1 + $0x11c] sm:$0xf]
    %v95 = vld [vmem:[%s2] sm:$0x1]
    %v97 = vlaneseq
    %v98 = vshrl.u32 %v97, 7
    %v99 = vsub.s32 0, %v98
    %v100 = vrot.slane %v95, %v99
    %v110 = vcombine.low %v15, %v17
    %v111 = vcombine.high %v15, %v17
    %v112 = vcombine.low %v19, %v21
    %v113 = vcombine.high %v19, %v21
    %v115 = vunpack.c.l.s4 1983009808
    %v116 = vunpack.c.0.s8 %v115
    %v117 = vlaneseq
    %v118 = vshrl.u32 %v117, 7
    %v119 = vsub.s32 %v116, %v118
    %v120 = vrot.slane %v110, %v119
    %v122 = vunpack.c.l.s4 1983009808
    %v123 = vunpack.c.0.s8 %v122
    %v124 = vlaneseq
    %v125 = vshrl.u32 %v124, 7
    %v126 = vsub.s32 %v123, %v125
    %v127 = vrot.slane %v111, %v126
    %v129 = vunpack.c.l.s4 1983009808
    %v130 = vunpack.c.0.s8 %v129
    %v131 = vlaneseq
    %v132 = vshrl.u32 %v131, 7
    %v133 = vsub.s32 %v130, %v132
    %v134 = vrot.slane %v112, %v133
    %v136 = vunpack.c.l.s4 1983009808
    %v137 = vunpack.c.0.s8 %v136
    %v138 = vlaneseq
    %v139 = vshrl.u32 %v138, 7
    %v140 = vsub.s32 %v137, %v139
    %v141 = vrot.slane %v113, %v140
    %v142 = vcombine.low %v120, %v134
    %v143 = vcombine.high %v120, %v134
    %v144 = vcombine.low %v127, %v141
    %v145 = vcombine.high %v127, %v141
    %v146 = vcombine.low %v16, %v18
    %v147 = vcombine.low %v20, %v22
    %v149 = vunpack.c.l.s4 1983009808
    %v150 = vunpack.c.0.s8 %v149
    %v151 = vlaneseq
    %v152 = vshrl.u32 %v151, 7
    %v153 = vsub.s32 %v150, %v152
    %v154 = vrot.slane %v146, %v153
    %v156 = vunpack.c.l.s4 1983009808
    %v157 = vunpack.c.0.s8 %v156
    %v158 = vlaneseq
    %v159 = vshrl.u32 %v158, 7
    %v160 = vsub.s32 %v157, %v159
    %v161 = vrot.slane %v147, %v160
    %v162 = vcombine.low %v154, %v161
    %v239 = vunpack.c.l.b16 %v23
    %v240 = vunpack.c.l.b16 %v24
    %v241 = vunpack.c.l.b16 %v25
    %v242 = vunpack.c.l.b16 %v26
    %v243 = vunpack.c.l.b16 %v27
    %v244 = vunpack.c.l.b16 %v28
    %v245 = vunpack.c.l.b16 %v29
    %v246 = vunpack.c.l.b16 %v30
    %v247 = vunpack.c.l.b16 %v31
    %v248 = vunpack.c.l.b16 %v32
    %v249 = vunpack.c.l.b16 %v33
    %v250 = vunpack.c.l.b16 %v34
    %v251 = vunpack.c.l.b16 %v35
    %v252 = vunpack.c.l.b16 %v36
    %v253 = vunpack.c.l.b16 %v37
    %v254 = vunpack.c.l.b16 %v38
    %v255 = vunpack.c.l.b16 %v39
    %v256 = vunpack.c.l.b16 %v40
    %v257 = vunpack.c.l.b16 %v41
    %v258 = vunpack.c.l.b16 %v42
    %v259 = vunpack.c.l.b16 %v43
    %v260 = vunpack.c.l.b16 %v44
    %v261 = vunpack.c.l.b16 %v45
    %v262 = vunpack.c.l.b16 %v46
    %v263 = vunpack.c.l.b16 %v47
    %v264 = vunpack.c.l.b16 %v48
    %v265 = vunpack.c.l.b16 %v49
    %v266 = vunpack.c.l.b16 %v50
    %v267 = vunpack.c.l.b16 %v51
    %v268 = vunpack.c.l.b16 %v52
    %v269 = vunpack.c.l.b16 %v53
    %v270 = vunpack.c.l.b16 %v54
    %v271 = vunpack.c.l.b16 %v55
    %v272 = vunpack.c.l.b16 %v56
    %v273 = vunpack.c.l.b16 %v57
    %v274 = vunpack.c.l.b16 %v58
    %v275 = vunpack.c.l.b16 %v59
    %v276 = vunpack.c.l.b16 %v60
    %v277 = vunpack.c.l.b16 %v61
    %v278 = vunpack.c.l.b16 %v62
    %v279 = vunpack.c.l.b16 %v63
    %v280 = vunpack.c.l.b16 %v64
    %v281 = vunpack.c.l.b16 %v65
    %v282 = vunpack.c.l.b16 %v66
    %v283 = vunpack.c.l.b16 %v67
    %v284 = vunpack.c.l.b16 %v68
    %v285 = vunpack.c.l.b16 %v69
    %v286 = vunpack.c.l.b16 %v70
    %v287 = vunpack.c.l.b16 %v71
    %v288 = vunpack.c.l.b16 %v72
    %v289 = vunpack.c.l.b16 %v73
    %v290 = vunpack.c.l.b16 %v74
    %v291 = vunpack.c.l.b16 %v75
    %v292 = vunpack.c.l.b16 %v76
    %v293 = vunpack.c.l.b16 %v77
    %v294 = vunpack.c.l.b16 %v78
    %v295 = vunpack.c.l.b16 %v79
    %v296 = vunpack.c.l.b16 %v80
    %v297 = vunpack.c.l.b16 %v81
    %v298 = vunpack.c.l.b16 %v82
    %v299 = vunpack.c.l.b16 %v83
    %v300 = vunpack.c.l.b16 %v84
    %v301 = vunpack.c.l.b16 %v85
    %v302 = vunpack.c.l.b16 %v86
    %v303 = vunpack.c.l.b16 %v87
    %v304 = vunpack.c.l.b16 %v88
    %v305 = vunpack.c.l.b16 %v89
    %v306 = vunpack.c.l.b16 %v90
    %v307 = vunpack.c.l.b16 %v91
    %v308 = vunpack.c.l.b16 %v92
    %v309 = vunpack.c.l.b16 %v93
    %v310 = vunpack.c.l.b16 %v94
    %v311 = vpack.c.b16 %v240, %v239
    %v312 = vpack.c.b16 %v242, %v241
    %v313 = vpack.c.b16 %v244, %v243
    %v314 = vpack.c.b16 %v246, %v245
    %v315 = vpack.c.b16 %v248, %v247
    %v316 = vpack.c.b16 %v250, %v249
    %v317 = vpack.c.b16 %v252, %v251
    %v318 = vpack.c.b16 %v254, %v253
    %v319 = vpack.c.b16 %v256, %v255
    %v320 = vpack.c.b16 %v258, %v257
    %v321 = vpack.c.b16 %v260, %v259
    %v322 = vpack.c.b16 %v262, %v261
    %v323 = vpack.c.b16 %v264, %v263
    %v324 = vpack.c.b16 %v266, %v265
    %v325 = vpack.c.b16 %v268, %v267
    %v326 = vpack.c.b16 %v270, %v269
    %v327 = vpack.c.b16 %v272, %v271
    %v328 = vpack.c.b16 %v274, %v273
    %v329 = vpack.c.b16 %v276, %v275
    %v330 = vpack.c.b16 %v278, %v277
    %v331 = vpack.c.b16 %v280, %v279
    %v332 = vpack.c.b16 %v282, %v281
    %v333 = vpack.c.b16 %v284, %v283
    %v334 = vpack.c.b16 %v286, %v285
    %v335 = vpack.c.b16 %v288, %v287
    %v336 = vpack.c.b16 %v290, %v289
    %v337 = vpack.c.b16 %v292, %v291
    %v338 = vpack.c.b16 %v294, %v293
    %v339 = vpack.c.b16 %v296, %v295
    %v340 = vpack.c.b16 %v298, %v297
    %v341 = vpack.c.b16 %v300, %v299
    %v342 = vpack.c.b16 %v302, %v301
    %v343 = vpack.c.b16 %v304, %v303
    %v344 = vpack.c.b16 %v306, %v305
    %v345 = vpack.c.b16 %v308, %v307
    %v346 = vpack.c.b16 %v310, %v309
    %vm383 = vcmask 523264
    %v385 = vsel %vm383, %v162, 0
    %387 = vmatprep.subr.bf16.mxu0 0
    %388 = vmatpush1.bf16.msra.mxu0 %v318
    %389 = vmatprep.subr.bf16.mxu0 0
    %390 = vmatpush1.bf16.msra.mxu0 %v317
    %391 = vmatprep.subr.bf16.mxu0 0
    %392 = vmatpush1.bf16.msra.mxu0 %v316
    %393 = vmatprep.subr.bf16.mxu0 0
    %394 = vmatpush1.bf16.msra.mxu0 %v315
    %395 = vmatprep.subr.bf16.mxu0 0
    %396 = vmatpush1.bf16.msra.mxu0 %v314
    %397 = vmatprep.subr.bf16.mxu0 0
    %398 = vmatpush1.bf16.msra.mxu0 %v313
    %399 = vmatprep.subr.bf16.mxu0 0
    %400 = vmatpush1.bf16.msra.mxu0 %v312
    %401 = vmatprep.subr.bf16.mxu0 0
    %402 = vmatpush1.bf16.msra.mxu0 %v311
    %403 = vmatprep.subr.bf16.mxu0 0
    %404 = vmatpush2.bf16.msra.mxu0 %v326
    %405 = vmatprep.subr.bf16.mxu0 0
    %406 = vmatpush2.bf16.msra.mxu0 %v325
    %407 = vmatprep.subr.bf16.mxu0 0
    %408 = vmatpush2.bf16.msra.mxu0 %v324
    %409 = vmatprep.subr.bf16.mxu0 0
    %410 = vmatpush2.bf16.msra.mxu0 %v323
    %411 = vmatprep.subr.bf16.mxu0 0
    %412 = vmatpush2.bf16.msra.mxu0 %v322
    %413 = vmatprep.subr.bf16.mxu0 0
    %414 = vmatpush2.bf16.msra.mxu0 %v321
    %415 = vmatprep.subr.bf16.mxu0 0
    %416 = vmatpush2.bf16.msra.mxu0 %v320
    %417 = vmatprep.subr.bf16.mxu0 0
    %418 = vmatpush2.bf16.msra.mxu0 %v319
    %419 = vmatprep.mubr.bf16.mxu0 %v143
    %420 = vmatmul.mubr.bf16.gmra.mxu0 %v142
    %v421 = vpop.f32.mrf.mxu0
    %v422 = vadd.f32 %v100, %v421
    %v423 = vpop.f32.mrf.mxu0
    %v424 = vpop.f32.mrf.mxu0
    %v425 = vadd.f32 %v100, %v424
    %v426 = vpop.f32.mrf.mxu0
    %427 = vdwg.mxu0
    %428 = vmatprep.subr.bf16.mxu0 0
    %429 = vmatpush1.bf16.msra.mxu0 %v334
    %430 = vmatprep.subr.bf16.mxu0 0
    %431 = vmatpush1.bf16.msra.mxu0 %v333
    %432 = vmatprep.subr.bf16.mxu0 0
    %433 = vmatpush1.bf16.msra.mxu0 %v332
    %434 = vmatprep.subr.bf16.mxu0 0
    %435 = vmatpush1.bf16.msra.mxu0 %v331
    %436 = vmatprep.subr.bf16.mxu0 0
    %437 = vmatpush1.bf16.msra.mxu0 %v330
    %438 = vmatprep.subr.bf16.mxu0 0
    %439 = vmatpush1.bf16.msra.mxu0 %v329
    %440 = vmatprep.subr.bf16.mxu0 0
    %441 = vmatpush1.bf16.msra.mxu0 %v328
    %442 = vmatprep.subr.bf16.mxu0 0
    %443 = vmatpush1.bf16.msra.mxu0 %v327
    %444 = vmatprep.subr.bf16.mxu0 0
    %445 = vmatpush2.bf16.msra.mxu0 %v342
    %446 = vmatprep.subr.bf16.mxu0 0
    %447 = vmatpush2.bf16.msra.mxu0 %v341
    %448 = vmatprep.subr.bf16.mxu0 0
    %449 = vmatpush2.bf16.msra.mxu0 %v340
    %450 = vmatprep.subr.bf16.mxu0 0
    %451 = vmatpush2.bf16.msra.mxu0 %v339
    %452 = vmatprep.subr.bf16.mxu0 0
    %453 = vmatpush2.bf16.msra.mxu0 %v338
    %454 = vmatprep.subr.bf16.mxu0 0
    %455 = vmatpush2.bf16.msra.mxu0 %v337
    %456 = vmatprep.subr.bf16.mxu0 0
    %457 = vmatpush2.bf16.msra.mxu0 %v336
    %458 = vmatprep.subr.bf16.mxu0 0
    %459 = vmatpush2.bf16.msra.mxu0 %v335
    %460 = vmatprep.mubr.bf16.mxu0 %v145
    %461 = vmatmul.mubr.bf16.gmra.mxu0 %v144
    %v462 = vpop.f32.mrf.mxu0
    %v463 = vadd.f32 %v422, %v462
    %v464 = vpop.f32.mrf.mxu0
    %v465 = vpop.f32.mrf.mxu0
    %v466 = vadd.f32 %v425, %v465
    %v467 = vpop.f32.mrf.mxu0
    %468 = vdwg.mxu0
    %469 = vmatprep.subr.bf16.mxu0 0
    %470 = vmatpush1.bf16.msra.mxu0 0
    %471 = vmatprep.subr.bf16.mxu0 0
    %472 = vmatpush1.bf16.msra.mxu0 0
    %473 = vmatprep.subr.bf16.mxu0 0
    %474 = vmatpush1.bf16.msra.mxu0 0
    %475 = vmatprep.subr.bf16.mxu0 0
    %476 = vmatpush1.bf16.msra.mxu0 0
    %477 = vmatprep.subr.bf16.mxu0 0
    %478 = vmatpush1.bf16.msra.mxu0 %v346
    %479 = vmatprep.subr.bf16.mxu0 0
    %480 = vmatpush1.bf16.msra.mxu0 %v345
    %481 = vmatprep.subr.bf16.mxu0 0
    %482 = vmatpush1.bf16.msra.mxu0 %v344
    %483 = vmatprep.subr.bf16.mxu0 0
    %484 = vmatpush1.bf16.msra.mxu0 %v343
    %485 = vmatprep.subr.bf16.mxu0 0
    %486 = vmatpush2.bf16.msra.mxu0 0
    %487 = vmatprep.subr.bf16.mxu0 0
    %488 = vmatpush2.bf16.msra.mxu0 0
    %489 = vmatprep.subr.bf16.mxu0 0
    %490 = vmatpush2.bf16.msra.mxu0 0
    %491 = vmatprep.subr.bf16.mxu0 0
    %492 = vmatpush2.bf16.msra.mxu0 0
    %493 = vmatprep.subr.bf16.mxu0 0
    %494 = vmatpush2.bf16.msra.mxu0 0
    %495 = vmatprep.subr.bf16.mxu0 0
    %496 = vmatpush2.bf16.msra.mxu0 0
    %497 = vmatprep.subr.bf16.mxu0 0
    %498 = vmatpush2.bf16.msra.mxu0 0
    %499 = vmatprep.subr.bf16.mxu0 0
    %500 = vmatpush2.bf16.msra.mxu0 0
    %501 = vmatprep.mubr.bf16.mxu0 0
    %502 = vmatmul.mubr.bf16.gmra.mxu0 %v385
    %v503 = vpop.f32.mrf.mxu0
    %v504 = vadd.f32 %v463, %v503
    %v505 = vpop.f32.mrf.mxu0
    %v506 = vpop.f32.mrf.mxu0
    %v507 = vadd.f32 %v466, %v506
    %v508 = vpop.f32.mrf.mxu0
    %509 = vdwg.mxu0
    %v510 = vmax.f32 %v504, 0.0
    %v511 = vmax.f32 %v507, 0.0
    %v512 = vpack.c.bf16 %v511, %v510
    %v514 = vcombine.high %v512, %v512
    %v516 = vunpack.c.l.s4 1983009808
    %v517 = vunpack.c.0.s8 %v516
    %v518 = vlaneseq
    %v519 = vshrl.u32 %v518, 7
    %v520 = vsub.s32 %v517, %v519
    %v521 = vrot.slane %v512, %v520
    %v523 = vunpack.c.l.s4 1983009808
    %v524 = vunpack.c.0.s8 %v523
    %v525 = vlaneseq
    %v526 = vshrl.u32 %v525, 7
    %v527 = vsub.s32 %v524, %v526
    %v528 = vrot.slane %v514, %v527
    %v529 = vcombine.high %v521, %v521
    %v530 = vcombine.high %v528, %v528
    %535 = vst [vmem:[#allocation2] sm:$0x3] %v521
    %536 = vst [vmem:[#allocation2 + $0x2] sm:$0x3] %v529
    %537 = vst [vmem:[#allocation2 + $0x4] sm:$0x3] %v528
    %538 = vst [vmem:[#allocation2 + $0x6] sm:$0x3] %v530
    // Predicated region
    $region14: #{forward.6} parent=1 // pred_check
      _
    $region15: #{forward.6} parent=1 // pred_check_branch
      %540 = sbr.rel (0) target = $region17
    $region16: #{forward.6} parent=1 // pred_region
      // Predicated region
      $region18: #{forward.6} parent=16 // pred_check
        _
      $region19: #{forward.6} parent=16 // pred_check_branch
        %542 = sbr.rel (0) target = $region21
      $region20: #{forward.6} parent=16 // pred_region
        // Predicated region
        $region22: #{forward.6} parent=20 // pred_check
          _
        $region23: #{forward.6} parent=20 // pred_check_branch
          %544 = sbr.rel target = $region25
        $region24: #{forward.6} parent=20 // pred_region
          // Predicated region
          $region37: #{forward.6} parent=24 // pred_check
            _
          $region38: #{forward.6} parent=24 // pred_check_branch
            %560 = sbr.rel (0) target = $region40
          $region39: #{forward.6} parent=24 // pred_region
            %s562 = ssub.s32 4, 1
            loop: start=0, step=1, limit=1
            $region41: #{forward.6} parent=39 // loop_pre_header
              _
            $region42: #{forward.6} parent=39 // loop_header
              %s564 = sphi 0, %s568
              %p565 = scmp.ge.s32.totalorder %s564, 1
              %s569 = sphi [#allocation2], [#allocation2]
              %s570 = sphi %s3, %s3
            $region43: #{forward.6} parent=39 // loop_header_branch
              %567 = sbr.rel (%p565) target = $region47
            $region44: #{forward.6} parent=39 // loop_body
              %v571 = vld [vmem:[%s569] sm:%s562]
              %572 = vst [vmem:[%s570] sm:%s562] %v571
            $region45: #{forward.6} parent=39 // loop_footer
              %s568 = sadd.s32 1, %s564
            $region46: #{forward.6} parent=39 // loop_footer_branch
              %563 = sbr.rel target = $region42
            $region47: #{forward.6} parent=39 // loop_exit
              _
          $region40: #{forward.6} parent=24 // pred_fallthru
            _
        $region25: #{forward.6} parent=20 // pred_fallthru
          _
        // Predicated region
        $region26: #{forward.6} parent=20 // pred_check
          _
        $region27: #{forward.6} parent=20 // pred_check_branch
          %546 = sbr.rel (0) target = $region29
        $region28: #{forward.6} parent=20 // pred_region
          %s548 = ssub.s32 4, 1
          loop: start=0, step=1, limit=1
          $region30: #{forward.6} parent=28 // loop_pre_header
            _
          $region31: #{forward.6} parent=28 // loop_header
            %s550 = sphi 0, %s554
            %p551 = scmp.ge.s32.totalorder %s550, 1
            %s555 = sphi [#allocation2], [#allocation2]
            %s556 = sphi %s3, %s3
          $region32: #{forward.6} parent=28 // loop_header_branch
            %553 = sbr.rel (%p551) target = $region36
          $region33: #{forward.6} parent=28 // loop_body
            %v557 = vld [vmem:[%s555] sm:%s548]
            %558 = vst [vmem:[%s556] sm:%s548] %v557
          $region34: #{forward.6} parent=28 // loop_footer
            %s554 = sadd.s32 1, %s550
          $region35: #{forward.6} parent=28 // loop_footer_branch
            %549 = sbr.rel target = $region31
          $region36: #{forward.6} parent=28 // loop_exit
            _
        $region29: #{forward.6} parent=20 // pred_fallthru
          _
      $region21: #{forward.6} parent=16 // pred_fallthru
        _
      %573 = vnop
    $region17: #{forward.6} parent=1 // pred_fallthru
      _
    // Predicated region
    $region48: #{forward.6} parent=1 // pred_check
      _
    $region49: #{forward.6} parent=1 // pred_check_branch
      %575 = sbr.rel (0) target = $region51
    $region50: #{forward.6} parent=1 // pred_region
      _
    $region51: #{forward.6} parent=1 // pred_fallthru
      _

// kernel: forward.7
$region0: #{forward.7}
  #allocation0 [shape = 'u32[]', space=smem, size = 0x4, offset = 0x4, fixed_abs, tag = 'smem constant byte address 0x4 - core index']
  #allocation1 [shape = 'u32[144,128]{1,0:T(1,128)}', space=vmem, size = 0x12000, scoped, tag = 'internal scratch']
  %s0 = inlined_call_operand.vmem [shape: bf16[2,256], index: 0, kind: input, shape index: {}]
  %s1 = inlined_call_operand.vmem [shape: bf16[256,128], index: 1, kind: input, shape index: {}]
  %s2 = inlined_call_operand.vmem [shape: f32[1,128], index: 2, kind: input, shape index: {}]
  %s3 = inlined_call_operand.hbm [shape: f32[2,128], index: 3, kind: output, shape index: {}]
  %s4 = sld [smem:[#allocation0]]
  $region22: #{forward.7} parent=0
    _
  %s6 = ssub.s32 1, %s4
  %s7 = scalar_select 0, %s6, %s4
  $region1: #{forward.7} parent=0
    #allocation2 [shape = 'u8[8192]{0}', space=vmem, size = 0x2000, scoped, tag = 'output window, operand 0, single buffered']
    #allocation3 [shape = 's32[1]{0}', space=sflag, size = 0x4, scoped, tag = 'scoped memory for forward.7']
    %8 = vsyncpa [#allocation3], 0
    // Predicated region
    $region2: #{forward.7} parent=1 // pred_check
      _
    $region3: #{forward.7} parent=1 // pred_check_branch
      %10 = sbr.rel (0) target = $region5
    $region4: #{forward.7} parent=1 // pred_region
      _
    $region5: #{forward.7} parent=1 // pred_fallthru
      _
    // Predicated region
    $region6: #{forward.7} parent=1 // pred_check
      _
    $region7: #{forward.7} parent=1 // pred_check_branch
      %12 = sbr.rel (0) target = $region9
    $region8: #{forward.7} parent=1 // pred_region
      _
    $region9: #{forward.7} parent=1 // pred_fallthru
      _
    // Predicated region
    $region10: #{forward.7} parent=1 // pred_check
      _
    $region11: #{forward.7} parent=1 // pred_check_branch
      %14 = sbr.rel (0) target = $region13
    $region12: #{forward.7} parent=1 // pred_region
      _
    $region13: #{forward.7} parent=1 // pred_fallthru
      _
    %v16 = vld [vmem:[%s0] sm:$0x3]
    %v17 = vld [vmem:[%s0 + $0x2] sm:$0x3]
    %v18 = vld [vmem:[%s0 + $0x4] sm:$0x3]
    %v19 = vld [vmem:[%s0 + $0x6] sm:$0x3]
    %v20 = vld [vmem:[%s0 + $0x8] sm:$0x3]
    %v21 = vld [vmem:[%s0 + $0xa] sm:$0x3]
    %v22 = vld [vmem:[%s0 + $0xc] sm:$0x3]
    %v23 = vld [vmem:[%s0 + $0xe] sm:$0x3]
    %v24 = vld [vmem:[%s1] sm:$0xf]
    %v25 = vld [vmem:[%s1 + $0x4] sm:$0xf]
    %v26 = vld [vmem:[%s1 + $0x8] sm:$0xf]
    %v27 = vld [vmem:[%s1 + $0xc] sm:$0xf]
    %v28 = vld [vmem:[%s1 + $0x10] sm:$0xf]
    %v29 = vld [vmem:[%s1 + $0x14] sm:$0xf]
    %v30 = vld [vmem:[%s1 + $0x18] sm:$0xf]
    %v31 = vld [vmem:[%s1 + $0x1c] sm:$0xf]
    %v32 = vld [vmem:[%s1 + $0x20] sm:$0xf]
    %v33 = vld [vmem:[%s1 + $0x24] sm:$0xf]
    %v34 = vld [vmem:[%s1 + $0x28] sm:$0xf]
    %v35 = vld [vmem:[%s1 + $0x2c] sm:$0xf]
    %v36 = vld [vmem:[%s1 + $0x30] sm:$0xf]
    %v37 = vld [vmem:[%s1 + $0x34] sm:$0xf]
    %v38 = vld [vmem:[%s1 + $0x38] sm:$0xf]
    %v39 = vld [vmem:[%s1 + $0x3c] sm:$0xf]
    %v40 = vld [vmem:[%s1 + $0x40] sm:$0xf]
    %v41 = vld [vmem:[%s1 + $0x44] sm:$0xf]
    %v42 = vld [vmem:[%s1 + $0x48] sm:$0xf]
    %v43 = vld [vmem:[%s1 + $0x4c] sm:$0xf]
    %v44 = vld [vmem:[%s1 + $0x50] sm:$0xf]
    %v45 = vld [vmem:[%s1 + $0x54] sm:$0xf]
    %v46 = vld [vmem:[%s1 + $0x58] sm:$0xf]
    %v47 = vld [vmem:[%s1 + $0x5c] sm:$0xf]
    %v48 = vld [vmem:[%s1 + $0x60] sm:$0xf]
    %v49 = vld [vmem:[%s1 + $0x64] sm:$0xf]
    %v50 = vld [vmem:[%s1 + $0x68] sm:$0xf]
    %v51 = vld [vmem:[%s1 + $0x6c] sm:$0xf]
    %v52 = vld [vmem:[%s1 + $0x70] sm:$0xf]
    %v53 = vld [vmem:[%s1 + $0x74] sm:$0xf]
    %v54 = vld [vmem:[%s1 + $0x78] sm:$0xf]
    %v55 = vld [vmem:[%s1 + $0x7c] sm:$0xf]
    %v56 = vld [vmem:[%s2] sm:$0x1]
    %v58 = vlaneseq
    %v59 = vshrl.u32 %v58, 7
    %v60 = vsub.s32 0, %v59
    %v61 = vrot.slane %v56, %v60
    %v71 = vcombine.low %v16, %v17
    %v72 = vcombine.low %v18, %v19
    %v73 = vcombine.low %v20, %v21
    %v74 = vcombine.low %v22, %v23
    %v76 = vunpack.c.l.s4 1966171168
    %v77 = vunpack.c.0.s8 %v76
    %v78 = vlaneseq
    %v79 = vshrl.u32 %v78, 7
    %v80 = vsub.s32 %v77, %v79
    %v81 = vrot.slane %v71, %v80
    %v83 = vunpack.c.l.s4 1966171168
    %v84 = vunpack.c.0.s8 %v83
    %v85 = vlaneseq
    %v86 = vshrl.u32 %v85, 7
    %v87 = vsub.s32 %v84, %v86
    %v88 = vrot.slane %v72, %v87
    %v90 = vunpack.c.l.s4 1966171168
    %v91 = vunpack.c.0.s8 %v90
    %v92 = vlaneseq
    %v93 = vshrl.u32 %v92, 7
    %v94 = vsub.s32 %v91, %v93
    %v95 = vrot.slane %v73, %v94
    %v97 = vunpack.c.l.s4 1966171168
    %v98 = vunpack.c.0.s8 %v97
    %v99 = vlaneseq
    %v100 = vshrl.u32 %v99, 7
    %v101 = vsub.s32 %v98, %v100
    %v102 = vrot.slane %v74, %v101
    %v103 = vcombine.low %v81, %v88
    %v104 = vcombine.high %v81, %v88
    %v105 = vcombine.low %v95, %v102
    %v106 = vcombine.high %v95, %v102
    %v108 = vunpack.c.l.s4 1966171168
    %v109 = vunpack.c.0.s8 %v108
    %v110 = vlaneseq
    %v111 = vshrl.u32 %v110, 7
    %v112 = vsub.s32 %v109, %v111
    %v113 = vrot.slane %v103, %v112
    %v115 = vunpack.c.l.s4 1966171168
    %v116 = vunpack.c.0.s8 %v115
    %v117 = vlaneseq
    %v118 = vshrl.u32 %v117, 7
    %v119 = vsub.s32 %v116, %v118
    %v120 = vrot.slane %v104, %v119
    %v122 = vunpack.c.l.s4 1966171168
    %v123 = vunpack.c.0.s8 %v122
    %v124 = vlaneseq
    %v125 = vshrl.u32 %v124, 7
    %v126 = vsub.s32 %v123, %v125
    %v127 = vrot.slane %v105, %v126
    %v129 = vunpack.c.l.s4 1966171168
    %v130 = vunpack.c.0.s8 %v129
    %v131 = vlaneseq
    %v132 = vshrl.u32 %v131, 7
    %v133 = vsub.s32 %v130, %v132
    %v134 = vrot.slane %v106, %v133
    %v135 = vcombine.low %v113, %v127
    %v136 = vcombine.low %v120, %v134
    %v171 = vunpack.c.l.b16 %v24
    %v172 = vunpack.c.l.b16 %v25
    %v173 = vunpack.c.l.b16 %v26
    %v174 = vunpack.c.l.b16 %v27
    %v175 = vunpack.c.l.b16 %v28
    %v176 = vunpack.c.l.b16 %v29
    %v177 = vunpack.c.l.b16 %v30
    %v178 = vunpack.c.l.b16 %v31
    %v179 = vunpack.c.l.b16 %v32
    %v180 = vunpack.c.l.b16 %v33
    %v181 = vunpack.c.l.b16 %v34
    %v182 = vunpack.c.l.b16 %v35
    %v183 = vunpack.c.l.b16 %v36
    %v184 = vunpack.c.l.b16 %v37
    %v185 = vunpack.c.l.b16 %v38
    %v186 = vunpack.c.l.b16 %v39
    %v187 = vunpack.c.l.b16 %v40
    %v188 = vunpack.c.l.b16 %v41
    %v189 = vunpack.c.l.b16 %v42
    %v190 = vunpack.c.l.b16 %v43
    %v191 = vunpack.c.l.b16 %v44
    %v192 = vunpack.c.l.b16 %v45
    %v193 = vunpack.c.l.b16 %v46
    %v194 = vunpack.c.l.b16 %v47
    %v195 = vunpack.c.l.b16 %v48
    %v196 = vunpack.c.l.b16 %v49
    %v197 = vunpack.c.l.b16 %v50
    %v198 = vunpack.c.l.b16 %v51
    %v199 = vunpack.c.l.b16 %v52
    %v200 = vunpack.c.l.b16 %v53
    %v201 = vunpack.c.l.b16 %v54
    %v202 = vunpack.c.l.b16 %v55
    %v203 = vpack.c.b16 %v172, %v171
    %v204 = vpack.c.b16 %v174, %v173
    %v205 = vpack.c.b16 %v176, %v175
    %v206 = vpack.c.b16 %v178, %v177
    %v207 = vpack.c.b16 %v180, %v179
    %v208 = vpack.c.b16 %v182, %v181
    %v209 = vpack.c.b16 %v184, %v183
    %v210 = vpack.c.b16 %v186, %v185
    %v211 = vpack.c.b16 %v188, %v187
    %v212 = vpack.c.b16 %v190, %v189
    %v213 = vpack.c.b16 %v192, %v191
    %v214 = vpack.c.b16 %v194, %v193
    %v215 = vpack.c.b16 %v196, %v195
    %v216 = vpack.c.b16 %v198, %v197
    %v217 = vpack.c.b16 %v200, %v199
    %v218 = vpack.c.b16 %v202, %v201
    %235 = vmatprep.subr.bf16.mxu0 0
    %236 = vmatpush1.bf16.msra.mxu0 %v210
    %237 = vmatprep.subr.bf16.mxu0 0
    %238 = vmatpush1.bf16.msra.mxu0 %v209
    %239 = vmatprep.subr.bf16.mxu0 0
    %240 = vmatpush1.bf16.msra.mxu0 %v208
    %241 = vmatprep.subr.bf16.mxu0 0
    %242 = vmatpush1.bf16.msra.mxu0 %v207
    %243 = vmatprep.subr.bf16.mxu0 0
    %244 = vmatpush1.bf16.msra.mxu0 %v206
    %245 = vmatprep.subr.bf16.mxu0 0
    %246 = vmatpush1.bf16.msra.mxu0 %v205
    %247 = vmatprep.subr.bf16.mxu0 0
    %248 = vmatpush1.bf16.msra.mxu0 %v204
    %249 = vmatprep.subr.bf16.mxu0 0
    %250 = vmatpush1.bf16.msra.mxu0 %v203
    %251 = vmatprep.subr.bf16.mxu0 0
    %252 = vmatpush2.bf16.msra.mxu0 %v218
    %253 = vmatprep.subr.bf16.mxu0 0
    %254 = vmatpush2.bf16.msra.mxu0 %v217
    %255 = vmatprep.subr.bf16.mxu0 0
    %256 = vmatpush2.bf16.msra.mxu0 %v216
    %257 = vmatprep.subr.bf16.mxu0 0
    %258 = vmatpush2.bf16.msra.mxu0 %v215
    %259 = vmatprep.subr.bf16.mxu0 0
    %260 = vmatpush2.bf16.msra.mxu0 %v214
    %261 = vmatprep.subr.bf16.mxu0 0
    %262 = vmatpush2.bf16.msra.mxu0 %v213
    %263 = vmatprep.subr.bf16.mxu0 0
    %264 = vmatpush2.bf16.msra.mxu0 %v212
    %265 = vmatprep.subr.bf16.mxu0 0
    %266 = vmatpush2.bf16.msra.mxu0 %v211
    %267 = vmatprep.mubr.bf16.mxu0 %v136
    %268 = vmatmul.mubr.bf16.gmra.mxu0 %v135
    %v269 = vpop.f32.mrf.mxu0
    %v270 = vadd.f32 %v61, %v269
    %v271 = vpop.f32.mrf.mxu0
    %v272 = vpop.f32.mrf.mxu0
    %v273 = vadd.f32 %v61, %v272
    %v274 = vpop.f32.mrf.mxu0
    %275 = vdwg.mxu0
    %v276 = vmax.f32 %v270, 0.0
    %v277 = vmax.f32 %v273, 0.0
    %278 = vst [vmem:[#allocation2] sm:$0xff] %v276
    %279 = vst [vmem:[#allocation2 + $0x8] sm:$0xff] %v277
    // Predicated region
    $region14: #{forward.7} parent=1 // pred_check
      _
    $region15: #{forward.7} parent=1 // pred_check_branch
      %281 = sbr.rel (0) target = $region17
    $region16: #{forward.7} parent=1 // pred_region
      %s283 = ssub.s32 256, 32
      %284 = vsyncadd [#allocation3], %s283
      %s285 = sshll.u32 [#allocation2], 4
      %s286 = int_to_ptr.vmem [resolvable:$true] %s285
      %291 = dma.vmem_to_hbm [thread:$0]  %s286, 32, %s3, [#allocation3], 32, 32, 2
    $region17: #{forward.7} parent=1 // pred_fallthru
      _
    // Predicated region
    $region18: #{forward.7} parent=1 // pred_check
      _
    $region19: #{forward.7} parent=1 // pred_check_branch
      %293 = sbr.rel (0) target = $region21
    $region20: #{forward.7} parent=1 // pred_region
      %294 = dma.done [#allocation3], 256
    $region21: #{forward.7} parent=1 // pred_fallthru
      _
    %295 = vsyncpa [#allocation3], 1

</llo_original>
